<compile_context>
chip_gen: v7x
topology: tpu7x:2x2x1
jax: 0.10.0
libtpu: 0.0.40
codegen_flags: <defaults>
</compile_context>

<pallas_src>
import functools

import jax
import jax.numpy as jnp
from jax.experimental import pallas as pl
from jax.experimental.pallas import tpu as pltpu

LANE = 128  # output lane padding target


def _round_up(x, m):
    return ((x + m - 1) // m) * m


def _tile_rows(m, max_tile=512):
    """Row-tile size: 512 for large M (fits v7x's 32 MiB scoped VMEM with
    headroom), otherwise the whole (8-aligned) extent."""
    return max_tile if m >= max_tile else _round_up(max(m, 1), 8)


# ----------------------------------------------------------------------------
# Pallas kernels
# ----------------------------------------------------------------------------
def matmul_bias_act_kernel(x_ref, w_ref, b_ref, o_ref, *, apply_relu):
    """Fused (TILE_M, K) @ (K, 128) + bias(1, 128) [+ ReLU]; bf16 in, f32 out."""
    acc = jnp.dot(x_ref[...], w_ref[...], preferred_element_type=jnp.float32)
    acc = acc + b_ref[...]
    if apply_relu:
        acc = jnp.maximum(acc, 0.0)
    o_ref[...] = acc


def fused_mlp_kernel(x_ref, w1_ref, b1_ref, w2_ref, b2_ref, w3_ref, b3_ref, o_ref):
    """fc1 -> ReLU -> fc2 -> ReLU -> fc3 in one kernel. All weights padded to
    128 output lanes / K padded with zero rows, so intermediates stay (TILE_M, 128)."""
    h = jnp.dot(x_ref[...], w1_ref[...], preferred_element_type=jnp.float32)
    h = jnp.maximum(h + b1_ref[...], 0.0)
    h = jnp.dot(h.astype(jnp.bfloat16), w2_ref[...], preferred_element_type=jnp.float32)
    h = jnp.maximum(h + b2_ref[...], 0.0)
    h = jnp.dot(h.astype(jnp.bfloat16), w3_ref[...], preferred_element_type=jnp.float32)
    o_ref[...] = h + b3_ref[...]


def maxpool4_kernel(x_ref, o_ref):
    """x_ref: (4, TILE_R, 128) = the 4 taps of each 2x2 window (lane-dense).
    Pure VPU elementwise max; o_ref: (TILE_R, 128)."""
    o_ref[...] = jnp.maximum(jnp.maximum(x_ref[0], x_ref[1]),
                             jnp.maximum(x_ref[2], x_ref[3]))


# ----------------------------------------------------------------------------
# pallas_call wrappers
# ----------------------------------------------------------------------------
def matmul_bias_act(x, w_pad, b_pad, apply_relu):
    """x: (M, K) f32; w_pad: (K_pad, 128) bf16; b_pad: (1, 128) f32 -> (M, 128) f32."""
    M, K = x.shape
    K_pad, N_pad = w_pad.shape
    tile_m = _tile_rows(M)
    M_pad = _round_up(M, tile_m)

    xb = jnp.pad(x.astype(jnp.bfloat16), ((0, M_pad - M), (0, K_pad - K)))

    kern = functools.partial(matmul_bias_act_kernel, apply_relu=apply_relu)
    out = pl.pallas_call(
        kern,
        out_shape=jax.ShapeDtypeStruct((M_pad, N_pad), jnp.float32),
        grid=(M_pad // tile_m,),
        in_specs=[
            pl.BlockSpec((tile_m, K_pad), lambda i: (i, 0)),
            pl.BlockSpec((K_pad, N_pad), lambda i: (0, 0)),
            pl.BlockSpec((1, N_pad), lambda i: (0, 0)),
        ],
        out_specs=pl.BlockSpec((tile_m, N_pad), lambda i: (i, 0)),
        compiler_params=pltpu.CompilerParams(dimension_semantics=("parallel",)),
        cost_estimate=pl.CostEstimate(
            flops=2 * M_pad * K_pad * N_pad,
            transcendentals=0,
            bytes_accessed=M_pad * K_pad * 2 + K_pad * N_pad * 2 + M_pad * N_pad * 4,
        ),
    )(xb, w_pad, b_pad)
    return out[:M]


def conv2d_relu_nhwc(x, w_pad, b_pad, cout, kh=5, kw=5):
    """Valid conv, stride 1, + bias + ReLU. x: (N, H, W, C) f32.
    w_pad: (K_pad, 128) bf16 in (kh, kw, cin) flatten order; b_pad: (1, 128) f32."""
    N, H, W, C = x.shape
    Ho, Wo = H - kh + 1, W - kw + 1
    taps = []
    for i in range(kh):
        for j in range(kw):
            taps.append(x[:, i:i + Ho, j:j + Wo, :])       # (N, Ho, Wo, C)
    patches = jnp.stack(taps, axis=3)                      # (N, Ho, Wo, kh*kw, C)
    patches = patches.reshape(N * Ho * Wo, kh * kw * C)    # (M, K), (kh,kw,C) order
    y = matmul_bias_act(patches, w_pad, b_pad, apply_relu=True)  # (M, 128)
    return y[:, :cout].reshape(N, Ho, Wo, cout)


def maxpool2x2_nhwc(x):
    """x: (N, H, W, C) NHWC f32, 2x2 stride-2 max pool -> (N, H//2, W//2, C)."""
    N, H, W, C = x.shape
    Ho, Wo = H // 2, W // 2
    L = N * Ho * Wo * C
    taps = jnp.stack(
        [
            x[:, 0::2, 0::2, :].reshape(-1),
            x[:, 0::2, 1::2, :].reshape(-1),
            x[:, 1::2, 0::2, :].reshape(-1),
            x[:, 1::2, 1::2, :].reshape(-1),
        ],
        axis=0,
    )  # (4, L)

    # Lane-dense layout: (4, R, 128); tile over R ("parallel").
    r_needed = pl.cdiv(L, LANE)
    tile_r = 64 if r_needed >= 64 else _round_up(r_needed, 8)
    r_pad = _round_up(r_needed, tile_r)
    l_pad = r_pad * LANE
    taps = jnp.pad(taps, ((0, 0), (0, l_pad - L))).reshape(4, r_pad, LANE)

    out = pl.pallas_call(
        maxpool4_kernel,
        out_shape=jax.ShapeDtypeStruct((r_pad, LANE), jnp.float32),
        grid=(r_pad // tile_r,),
        in_specs=[pl.BlockSpec((4, tile_r, LANE), lambda i: (0, i, 0))],
        out_specs=pl.BlockSpec((tile_r, LANE), lambda i: (i, 0)),
        compiler_params=pltpu.CompilerParams(dimension_semantics=("parallel",)),
    )(taps)
    return out.reshape(-1)[:L].reshape(N, Ho, Wo, C)


def fused_fc(x, prep):
    """x: (M, 400) f32 (NHWC flatten order) -> (M, 10) f32 via fc1/fc2/fc3."""
    M, K = x.shape
    tile_m = _tile_rows(M)
    M_pad = _round_up(M, tile_m)
    xb = jnp.pad(x.astype(jnp.bfloat16), ((0, M_pad - M), (0, 0)))

    def full(shape):
        return pl.BlockSpec(shape, lambda i: (0, 0))

    out = pl.pallas_call(
        fused_mlp_kernel,
        out_shape=jax.ShapeDtypeStruct((M_pad, LANE), jnp.float32),
        grid=(M_pad // tile_m,),
        in_specs=[
            pl.BlockSpec((tile_m, K), lambda i: (i, 0)),
            full((K, LANE)), full((1, LANE)),          # fc1
            full((LANE, LANE)), full((1, LANE)),       # fc2
            full((LANE, LANE)), full((1, LANE)),       # fc3
        ],
        out_specs=pl.BlockSpec((tile_m, LANE), lambda i: (i, 0)),
        compiler_params=pltpu.CompilerParams(dimension_semantics=("parallel",)),
        cost_estimate=pl.CostEstimate(
            flops=2 * M_pad * (K * LANE + LANE * LANE + LANE * LANE),
            transcendentals=0,
            bytes_accessed=M_pad * K * 2 + (K * LANE + 2 * LANE * LANE) * 2
            + M_pad * LANE * 4,
        ),
    )(xb, prep["fc1_w"], prep["fc1_b"], prep["fc2_w"], prep["fc2_b"],
      prep["fc3_w"], prep["fc3_b"])
    return out[:M, :10]


# ----------------------------------------------------------------------------
# Parameters (PyTorch-default-ish uniform init) + one-time layout preparation
# ----------------------------------------------------------------------------
def init_params(key):
    def uniform(k, shape, fan_in):
        bound = 1.0 / jnp.sqrt(float(fan_in))
        return jax.random.uniform(k, shape, jnp.float32, -bound, bound)

    ks = jax.random.split(key, 10)
    return {
        "conv1_w": uniform(ks[0], (6, 3, 5, 5), 3 * 5 * 5),
        "conv1_b": uniform(ks[1], (6,), 3 * 5 * 5),
        "conv2_w": uniform(ks[2], (16, 6, 5, 5), 6 * 5 * 5),
        "conv2_b": uniform(ks[3], (16,), 6 * 5 * 5),
        "fc1_w": uniform(ks[4], (120, 400), 400),
        "fc1_b": uniform(ks[5], (120,), 400),
        "fc2_w": uniform(ks[6], (84, 120), 120),
        "fc2_b": uniform(ks[7], (84,), 120),
        "fc3_w": uniform(ks[8], (10, 84), 84),
        "fc3_b": uniform(ks[9], (10,), 84),
    }


def prepare_params(params):
    """Hoist all transposes / paddings / casts out of the jitted forward."""
    def pad2(a, rows, cols):
        r, c = a.shape
        return jnp.pad(a, ((0, rows - r), (0, cols - c)))

    def conv_prep(w, b):
        cout, cin, kh, kw = w.shape
        k = kh * kw * cin
        # (Cout, Cin, KH, KW) -> (KH, KW, Cin) flatten order to match NHWC im2col
        wm = w.transpose(0, 2, 3, 1).reshape(cout, k).T            # (K, Cout)
        wm = pad2(wm, _round_up(k, 8), LANE).astype(jnp.bfloat16)  # K->8k, N->128
        bm = pad2(b.reshape(1, cout), 1, LANE).astype(jnp.float32)
        return wm, bm

    def fc_prep(w, b, k_pad):
        n, k = w.shape
        wm = pad2(w.T, k_pad, LANE).astype(jnp.bfloat16)           # (K_pad, 128)
        bm = pad2(b.reshape(1, n), 1, LANE).astype(jnp.float32)
        return wm, bm

    c1w, c1b = conv_prep(params["conv1_w"], params["conv1_b"])
    c2w, c2b = conv_prep(params["conv2_w"], params["conv2_b"])

    # fc1 consumes the flatten of a (N, 5, 5, 16) NHWC tensor; PyTorch's
    # x.view(-1, 400) flattens NCHW (C, H, W).  Permute the weight's input
    # dim once so the NHWC (H, W, C) flatten matches.
    fc1_w = params["fc1_w"].reshape(120, 16, 5, 5).transpose(0, 2, 3, 1).reshape(120, 400)
    f1w, f1b = fc_prep(fc1_w, params["fc1_b"], 400)
    f2w, f2b = fc_prep(params["fc2_w"], params["fc2_b"], LANE)   # K: 120 -> 128
    f3w, f3b = fc_prep(params["fc3_w"], params["fc3_b"], LANE)   # K: 84  -> 128

    return {
        "conv1_w": c1w, "conv1_b": c1b,
        "conv2_w": c2w, "conv2_b": c2b,
        "fc1_w": f1w, "fc1_b": f1b,
        "fc2_w": f2w, "fc2_b": f2b,
        "fc3_w": f3w, "fc3_b": f3b,
    }


# ----------------------------------------------------------------------------
# Forward pass (matches ConvNet.forward semantics)
# ----------------------------------------------------------------------------
@jax.jit
def convnet_forward(prep, x_nchw):
    # x: (N, 3, 32, 32) f32 NCHW (PyTorch convention). Convert to NHWC once.
    x = jnp.transpose(x_nchw, (0, 2, 3, 1)).astype(jnp.float32)       # (N, 32, 32, 3)
    x = conv2d_relu_nhwc(x, prep["conv1_w"], prep["conv1_b"], cout=6)  # (N, 28, 28, 6)
    x = maxpool2x2_nhwc(x)                                             # (N, 14, 14, 6)
    x = conv2d_relu_nhwc(x, prep["conv2_w"], prep["conv2_b"], cout=16) # (N, 10, 10, 16)
    x = maxpool2x2_nhwc(x)                                             # (N, 5, 5, 16)
    N = x.shape[0]
    x = x.reshape(N, 5 * 5 * 16)   # (H, W, C) order; fc1 weight pre-permuted to match
    return fused_fc(x, prep)       # (N, 10)


if __name__ == "__main__":
    key = jax.random.PRNGKey(0)
    k_params, k_x = jax.random.split(key)
    params = init_params(k_params)
    prep = prepare_params(params)
    # Input shape implied by the forward pass (16*5*5 flatten): (N, 3, 32, 32)
    x = jax.random.normal(k_x, (2, 3, 32, 32), jnp.float32)
    out = convnet_forward(prep, x)
    jax.block_until_ready(out)
    assert out.shape == (2, 10) and out.dtype == jnp.float32
    print("KERNEL_OK")
</pallas_src>

<mosaic_0001>
module attributes {stable_mosaic.version = 11 : i64} {
  func.func @matmul_bias_act_kernel(%arg0: i32, %arg1: memref<512x80xbf16, #tpu.memory_space<vmem>>, %arg2: memref<80x128xbf16, #tpu.memory_space<vmem>>, %arg3: memref<1x128xf32, #tpu.memory_space<vmem>>, %arg4: memref<512x128xf32, #tpu.memory_space<vmem>>) attributes {dimension_semantics = [#tpu.dimension_semantics<parallel>], iteration_bounds = array<i64: 4>, scalar_prefetch = 0 : i64, scratch_operands = 0 : i64, tpu.core_type = #tpu.core_type<tc>, window_params = [{transform_indices = @transform_0, window_bounds = array<i64: 512, 80>}, {pipeline_mode = #tpu.pipeline_mode<synchronous>, transform_indices = @transform_1, window_bounds = array<i64: 80, 128>}, {pipeline_mode = #tpu.pipeline_mode<synchronous>, transform_indices = @transform_2, window_bounds = array<i64: 1, 128>}, {transform_indices = @transform_3, window_bounds = array<i64: 512, 128>}]} {
    %c0 = arith.constant 0 : index
    %c0_0 = arith.constant 0 : index
    %0 = vector.load %arg1[%c0, %c0_0] : memref<512x80xbf16, #tpu.memory_space<vmem>>, vector<512x80xbf16>
    %c0_1 = arith.constant 0 : index
    %c0_2 = arith.constant 0 : index
    %1 = vector.load %arg2[%c0_1, %c0_2] : memref<80x128xbf16, #tpu.memory_space<vmem>>, vector<80x128xbf16>
    %cst = arith.constant dense<0.000000e+00> : vector<512x128xf32>
    %2 = tpu.matmul %0, %1, %cst {dimension_numbers = #tpu.dot_dimension_numbers<[1], [0], [0], [1], [0, 0, 1, 1], [], []>} : vector<512x80xbf16>, vector<80x128xbf16>, vector<512x128xf32> -> vector<512x128xf32>
    %c0_3 = arith.constant 0 : index
    %c0_4 = arith.constant 0 : index
    %3 = vector.load %arg3[%c0_3, %c0_4] : memref<1x128xf32, #tpu.memory_space<vmem>>, vector<1x128xf32>
    %4 = vector.broadcast %3 : vector<1x128xf32> to vector<512x128xf32>
    %5 = arith.addf %2, %4 : vector<512x128xf32>
    %cst_5 = arith.constant 0.000000e+00 : f32
    %6 = vector.broadcast %cst_5 : f32 to vector<512x128xf32>
    %7 = arith.maximumf %5, %6 : vector<512x128xf32>
    %c0_6 = arith.constant 0 : index
    %c0_7 = arith.constant 0 : index
    %8 = vector.load %arg4[%c0_6, %c0_7] : memref<512x128xf32, #tpu.memory_space<vmem>>, vector<512x128xf32>
    tpu.vector_store %arg4[%c0_6, %c0_7], %7 {strides = array<i32>} : memref<512x128xf32, #tpu.memory_space<vmem>>, vector<512x128xf32>,
    return
  }
  func.func @transform_0(%arg0: i32) -> (i32, i32) {
    %c0_i32 = arith.constant 0 : i32
    %c0_i32_0 = arith.constant 0 : i32
    return %arg0, %c0_i32 : i32, i32
  }
  func.func @transform_1(%arg0: i32) -> (i32, i32) {
    %c0_i32 = arith.constant 0 : i32
    %c0_i32_0 = arith.constant 0 : i32
    %c0_i32_1 = arith.constant 0 : i32
    return %c0_i32, %c0_i32_0 : i32, i32
  }
  func.func @transform_2(%arg0: i32) -> (i32, i32) {
    %c0_i32 = arith.constant 0 : i32
    %c0_i32_0 = arith.constant 0 : i32
    %c0_i32_1 = arith.constant 0 : i32
    return %c0_i32, %c0_i32_0 : i32, i32
  }
  func.func @transform_3(%arg0: i32) -> (i32, i32) {
    %c0_i32 = arith.constant 0 : i32
    %c0_i32_0 = arith.constant 0 : i32
    return %arg0, %c0_i32 : i32, i32
  }
}

module attributes {stable_mosaic.version = 11 : i64} {
  func.func @maxpool4_kernel(%arg0: i32, %arg1: memref<4x24x128xf32, #tpu.memory_space<vmem>>, %arg2: memref<24x128xf32, #tpu.memory_space<vmem>>) attributes {dimension_semantics = [#tpu.dimension_semantics<parallel>], iteration_bounds = array<i64: 1>, scalar_prefetch = 0 : i64, scratch_operands = 0 : i64, tpu.core_type = #tpu.core_type<tc>, window_params = [{transform_indices = @transform_0, window_bounds = array<i64: 4, 24, 128>}, {transform_indices = @transform_1, window_bounds = array<i64: 24, 128>}]} {
    %c0 = arith.constant 0 : index
    %c0_0 = arith.constant 0 : index
    %c0_1 = arith.constant 0 : index
    %0 = vector.load %arg1[%c0, %c0_0, %c0_1] : memref<4x24x128xf32, #tpu.memory_space<vmem>>, vector<1x24x128xf32>
    %1 = vector.shape_cast %0 : vector<1x24x128xf32> to vector<24x128xf32>
    %c1 = arith.constant 1 : index
    %c0_2 = arith.constant 0 : index
    %c0_3 = arith.constant 0 : index
    %2 = vector.load %arg1[%c1, %c0_2, %c0_3] : memref<4x24x128xf32, #tpu.memory_space<vmem>>, vector<1x24x128xf32>
    %3 = vector.shape_cast %2 : vector<1x24x128xf32> to vector<24x128xf32>
    %4 = arith.maximumf %1, %3 : vector<24x128xf32>
    %c2 = arith.constant 2 : index
    %c0_4 = arith.constant 0 : index
    %c0_5 = arith.constant 0 : index
    %5 = vector.load %arg1[%c2, %c0_4, %c0_5] : memref<4x24x128xf32, #tpu.memory_space<vmem>>, vector<1x24x128xf32>
    %6 = vector.shape_cast %5 : vector<1x24x128xf32> to vector<24x128xf32>
    %c3 = arith.constant 3 : index
    %c0_6 = arith.constant 0 : index
    %c0_7 = arith.constant 0 : index
    %7 = vector.load %arg1[%c3, %c0_6, %c0_7] : memref<4x24x128xf32, #tpu.memory_space<vmem>>, vector<1x24x128xf32>
    %8 = vector.shape_cast %7 : vector<1x24x128xf32> to vector<24x128xf32>
    %9 = arith.maximumf %6, %8 : vector<24x128xf32>
    %10 = arith.maximumf %4, %9 : vector<24x128xf32>
    %c0_8 = arith.constant 0 : index
    %c0_9 = arith.constant 0 : index
    %11 = vector.load %arg2[%c0_8, %c0_9] : memref<24x128xf32, #tpu.memory_space<vmem>>, vector<24x128xf32>
    tpu.vector_store %arg2[%c0_8, %c0_9], %10 {strides = array<i32>} : memref<24x128xf32, #tpu.memory_space<vmem>>, vector<24x128xf32>,
    return
  }
  func.func @transform_0(%arg0: i32) -> (i32, i32, i32) {
    %c0_i32 = arith.constant 0 : i32
    %c0_i32_0 = arith.constant 0 : i32
    %c0_i32_1 = arith.constant 0 : i32
    return %c0_i32, %arg0, %c0_i32_0 : i32, i32, i32
  }
  func.func @transform_1(%arg0: i32) -> (i32, i32) {
    %c0_i32 = arith.constant 0 : i32
    %c0_i32_0 = arith.constant 0 : i32
    return %arg0, %c0_i32 : i32, i32
  }
}

module attributes {stable_mosaic.version = 11 : i64} {
  func.func @matmul_bias_act_kernel(%arg0: i32, %arg1: memref<200x152xbf16, #tpu.memory_space<vmem>>, %arg2: memref<152x128xbf16, #tpu.memory_space<vmem>>, %arg3: memref<1x128xf32, #tpu.memory_space<vmem>>, %arg4: memref<200x128xf32, #tpu.memory_space<vmem>>) attributes {dimension_semantics = [#tpu.dimension_semantics<parallel>], iteration_bounds = array<i64: 1>, scalar_prefetch = 0 : i64, scratch_operands = 0 : i64, tpu.core_type = #tpu.core_type<tc>, window_params = [{transform_indices = @transform_0, window_bounds = array<i64: 200, 152>}, {pipeline_mode = #tpu.pipeline_mode<synchronous>, transform_indices = @transform_1, window_bounds = array<i64: 152, 128>}, {pipeline_mode = #tpu.pipeline_mode<synchronous>, transform_indices = @transform_2, window_bounds = array<i64: 1, 128>}, {transform_indices = @transform_3, window_bounds = array<i64: 200, 128>}]} {
    %c0 = arith.constant 0 : index
    %c0_0 = arith.constant 0 : index
    %0 = vector.load %arg1[%c0, %c0_0] : memref<200x152xbf16, #tpu.memory_space<vmem>>, vector<200x152xbf16>
    %c0_1 = arith.constant 0 : index
    %c0_2 = arith.constant 0 : index
    %1 = vector.load %arg2[%c0_1, %c0_2] : memref<152x128xbf16, #tpu.memory_space<vmem>>, vector<152x128xbf16>
    %cst = arith.constant dense<0.000000e+00> : vector<200x128xf32>
    %2 = tpu.matmul %0, %1, %cst {dimension_numbers = #tpu.dot_dimension_numbers<[1], [0], [0], [1], [0, 0, 1, 1], [], []>} : vector<200x152xbf16>, vector<152x128xbf16>, vector<200x128xf32> -> vector<200x128xf32>
    %c0_3 = arith.constant 0 : index
    %c0_4 = arith.constant 0 : index
    %3 = vector.load %arg3[%c0_3, %c0_4] : memref<1x128xf32, #tpu.memory_space<vmem>>, vector<1x128xf32>
    %4 = vector.broadcast %3 : vector<1x128xf32> to vector<200x128xf32>
    %5 = arith.addf %2, %4 : vector<200x128xf32>
    %cst_5 = arith.constant 0.000000e+00 : f32
    %6 = vector.broadcast %cst_5 : f32 to vector<200x128xf32>
    %7 = arith.maximumf %5, %6 : vector<200x128xf32>
    %c0_6 = arith.constant 0 : index
    %c0_7 = arith.constant 0 : index
    %8 = vector.load %arg4[%c0_6, %c0_7] : memref<200x128xf32, #tpu.memory_space<vmem>>, vector<200x128xf32>
    tpu.vector_store %arg4[%c0_6, %c0_7], %7 {strides = array<i32>} : memref<200x128xf32, #tpu.memory_space<vmem>>, vector<200x128xf32>,
    return
  }
  func.func @transform_0(%arg0: i32) -> (i32, i32) {
    %c0_i32 = arith.constant 0 : i32
    %c0_i32_0 = arith.constant 0 : i32
    return %arg0, %c0_i32 : i32, i32
  }
  func.func @transform_1(%arg0: i32) -> (i32, i32) {
    %c0_i32 = arith.constant 0 : i32
    %c0_i32_0 = arith.constant 0 : i32
    %c0_i32_1 = arith.constant 0 : i32
    return %c0_i32, %c0_i32_0 : i32, i32
  }
  func.func @transform_2(%arg0: i32) -> (i32, i32) {
    %c0_i32 = arith.constant 0 : i32
    %c0_i32_0 = arith.constant 0 : i32
    %c0_i32_1 = arith.constant 0 : i32
    return %c0_i32, %c0_i32_0 : i32, i32
  }
  func.func @transform_3(%arg0: i32) -> (i32, i32) {
    %c0_i32 = arith.constant 0 : i32
    %c0_i32_0 = arith.constant 0 : i32
    return %arg0, %c0_i32 : i32, i32
  }
}

module attributes {stable_mosaic.version = 11 : i64} {
  func.func @maxpool4_kernel(%arg0: i32, %arg1: memref<4x8x128xf32, #tpu.memory_space<vmem>>, %arg2: memref<8x128xf32, #tpu.memory_space<vmem>>) attributes {dimension_semantics = [#tpu.dimension_semantics<parallel>], iteration_bounds = array<i64: 1>, scalar_prefetch = 0 : i64, scratch_operands = 0 : i64, tpu.core_type = #tpu.core_type<tc>, window_params = [{transform_indices = @transform_0, window_bounds = array<i64: 4, 8, 128>}, {transform_indices = @transform_1, window_bounds = array<i64: 8, 128>}]} {
    %c0 = arith.constant 0 : index
    %c0_0 = arith.constant 0 : index
    %c0_1 = arith.constant 0 : index
    %0 = vector.load %arg1[%c0, %c0_0, %c0_1] : memref<4x8x128xf32, #tpu.memory_space<vmem>>, vector<1x8x128xf32>
    %1 = vector.shape_cast %0 : vector<1x8x128xf32> to vector<8x128xf32>
    %c1 = arith.constant 1 : index
    %c0_2 = arith.constant 0 : index
    %c0_3 = arith.constant 0 : index
    %2 = vector.load %arg1[%c1, %c0_2, %c0_3] : memref<4x8x128xf32, #tpu.memory_space<vmem>>, vector<1x8x128xf32>
    %3 = vector.shape_cast %2 : vector<1x8x128xf32> to vector<8x128xf32>
    %4 = arith.maximumf %1, %3 : vector<8x128xf32>
    %c2 = arith.constant 2 : index
    %c0_4 = arith.constant 0 : index
    %c0_5 = arith.constant 0 : index
    %5 = vector.load %arg1[%c2, %c0_4, %c0_5] : memref<4x8x128xf32, #tpu.memory_space<vmem>>, vector<1x8x128xf32>
    %6 = vector.shape_cast %5 : vector<1x8x128xf32> to vector<8x128xf32>
    %c3 = arith.constant 3 : index
    %c0_6 = arith.constant 0 : index
    %c0_7 = arith.constant 0 : index
    %7 = vector.load %arg1[%c3, %c0_6, %c0_7] : memref<4x8x128xf32, #tpu.memory_space<vmem>>, vector<1x8x128xf32>
    %8 = vector.shape_cast %7 : vector<1x8x128xf32> to vector<8x128xf32>
    %9 = arith.maximumf %6, %8 : vector<8x128xf32>
    %10 = arith.maximumf %4, %9 : vector<8x128xf32>
    %c0_8 = arith.constant 0 : index
    %c0_9 = arith.constant 0 : index
    %11 = vector.load %arg2[%c0_8, %c0_9] : memref<8x128xf32, #tpu.memory_space<vmem>>, vector<8x128xf32>
    tpu.vector_store %arg2[%c0_8, %c0_9], %10 {strides = array<i32>} : memref<8x128xf32, #tpu.memory_space<vmem>>, vector<8x128xf32>,
    return
  }
  func.func @transform_0(%arg0: i32) -> (i32, i32, i32) {
    %c0_i32 = arith.constant 0 : i32
    %c0_i32_0 = arith.constant 0 : i32
    %c0_i32_1 = arith.constant 0 : i32
    return %c0_i32, %arg0, %c0_i32_0 : i32, i32, i32
  }
  func.func @transform_1(%arg0: i32) -> (i32, i32) {
    %c0_i32 = arith.constant 0 : i32
    %c0_i32_0 = arith.constant 0 : i32
    return %arg0, %c0_i32 : i32, i32
  }
}

module attributes {stable_mosaic.version = 11 : i64} {
  func.func @fused_mlp_kernel(%arg0: i32, %arg1: memref<8x400xbf16, #tpu.memory_space<vmem>>, %arg2: memref<400x128xbf16, #tpu.memory_space<vmem>>, %arg3: memref<1x128xf32, #tpu.memory_space<vmem>>, %arg4: memref<128x128xbf16, #tpu.memory_space<vmem>>, %arg5: memref<1x128xf32, #tpu.memory_space<vmem>>, %arg6: memref<128x128xbf16, #tpu.memory_space<vmem>>, %arg7: memref<1x128xf32, #tpu.memory_space<vmem>>, %arg8: memref<8x128xf32, #tpu.memory_space<vmem>>) attributes {dimension_semantics = [#tpu.dimension_semantics<parallel>], iteration_bounds = array<i64: 1>, scalar_prefetch = 0 : i64, scratch_operands = 0 : i64, tpu.core_type = #tpu.core_type<tc>, window_params = [{transform_indices = @transform_0, window_bounds = array<i64: 8, 400>}, {pipeline_mode = #tpu.pipeline_mode<synchronous>, transform_indices = @transform_1, window_bounds = array<i64: 400, 128>}, {pipeline_mode = #tpu.pipeline_mode<synchronous>, transform_indices = @transform_2, window_bounds = array<i64: 1, 128>}, {pipeline_mode = #tpu.pipeline_mode<synchronous>, transform_indices = @transform_3, window_bounds = array<i64: 128, 128>}, {pipeline_mode = #tpu.pipeline_mode<synchronous>, transform_indices = @transform_4, window_bounds = array<i64: 1, 128>}, {pipeline_mode = #tpu.pipeline_mode<synchronous>, transform_indices = @transform_5, window_bounds = array<i64: 128, 128>}, {pipeline_mode = #tpu.pipeline_mode<synchronous>, transform_indices = @transform_6, window_bounds = array<i64: 1, 128>}, {transform_indices = @transform_7, window_bounds = array<i64: 8, 128>}]} {
    %c0 = arith.constant 0 : index
    %c0_0 = arith.constant 0 : index
    %0 = vector.load %arg1[%c0, %c0_0] : memref<8x400xbf16, #tpu.memory_space<vmem>>, vector<8x400xbf16>
    %c0_1 = arith.constant 0 : index
    %c0_2 = arith.constant 0 : index
    %1 = vector.load %arg2[%c0_1, %c0_2] : memref<400x128xbf16, #tpu.memory_space<vmem>>, vector<400x128xbf16>
    %cst = arith.constant dense<0.000000e+00> : vector<8x128xf32>
    %2 = tpu.matmul %0, %1, %cst {dimension_numbers = #tpu.dot_dimension_numbers<[1], [0], [0], [1], [0, 0, 1, 1], [], []>} : vector<8x400xbf16>, vector<400x128xbf16>, vector<8x128xf32> -> vector<8x128xf32>
    %c0_3 = arith.constant 0 : index
    %c0_4 = arith.constant 0 : index
    %3 = vector.load %arg3[%c0_3, %c0_4] : memref<1x128xf32, #tpu.memory_space<vmem>>, vector<1x128xf32>
    %4 = vector.broadcast %3 : vector<1x128xf32> to vector<8x128xf32>
    %5 = arith.addf %2, %4 : vector<8x128xf32>
    %cst_5 = arith.constant 0.000000e+00 : f32
    %6 = vector.broadcast %cst_5 : f32 to vector<8x128xf32>
    %7 = arith.maximumf %5, %6 : vector<8x128xf32>
    %8 = arith.truncf %7 : vector<8x128xf32> to vector<8x128xbf16>
    %c0_6 = arith.constant 0 : index
    %c0_7 = arith.constant 0 : index
    %9 = vector.load %arg4[%c0_6, %c0_7] : memref<128x128xbf16, #tpu.memory_space<vmem>>, vector<128x128xbf16>
    %cst_8 = arith.constant dense<0.000000e+00> : vector<8x128xf32>
    %10 = tpu.matmul %8, %9, %cst_8 {dimension_numbers = #tpu.dot_dimension_numbers<[1], [0], [0], [1], [0, 0, 1, 1], [], []>} : vector<8x128xbf16>, vector<128x128xbf16>, vector<8x128xf32> -> vector<8x128xf32>
    %c0_9 = arith.constant 0 : index
    %c0_10 = arith.constant 0 : index
    %11 = vector.load %arg5[%c0_9, %c0_10] : memref<1x128xf32, #tpu.memory_space<vmem>>, vector<1x128xf32>
    %12 = vector.broadcast %11 : vector<1x128xf32> to vector<8x128xf32>
    %13 = arith.addf %10, %12 : vector<8x128xf32>
    %cst_11 = arith.constant 0.000000e+00 : f32
    %14 = vector.broadcast %cst_11 : f32 to vector<8x128xf32>
    %15 = arith.maximumf %13, %14 : vector<8x128xf32>
    %16 = arith.truncf %15 : vector<8x128xf32> to vector<8x128xbf16>
    %c0_12 = arith.constant 0 : index
    %c0_13 = arith.constant 0 : index
    %17 = vector.load %arg6[%c0_12, %c0_13] : memref<128x128xbf16, #tpu.memory_space<vmem>>, vector<128x128xbf16>
    %cst_14 = arith.constant dense<0.000000e+00> : vector<8x128xf32>
    %18 = tpu.matmul %16, %17, %cst_14 {dimension_numbers = #tpu.dot_dimension_numbers<[1], [0], [0], [1], [0, 0, 1, 1], [], []>} : vector<8x128xbf16>, vector<128x128xbf16>, vector<8x128xf32> -> vector<8x128xf32>
    %c0_15 = arith.constant 0 : index
    %c0_16 = arith.constant 0 : index
    %19 = vector.load %arg7[%c0_15, %c0_16] : memref<1x128xf32, #tpu.memory_space<vmem>>, vector<1x128xf32>
    %20 = vector.broadcast %19 : vector<1x128xf32> to vector<8x128xf32>
    %21 = arith.addf %18, %20 : vector<8x128xf32>
    %c0_17 = arith.constant 0 : index
    %c0_18 = arith.constant 0 : index
    %22 = vector.load %arg8[%c0_17, %c0_18] : memref<8x128xf32, #tpu.memory_space<vmem>>, vector<8x128xf32>
    tpu.vector_store %arg8[%c0_17, %c0_18], %21 {strides = array<i32>} : memref<8x128xf32, #tpu.memory_space<vmem>>, vector<8x128xf32>,
    return
  }
  func.func @transform_0(%arg0: i32) -> (i32, i32) {
    %c0_i32 = arith.constant 0 : i32
    %c0_i32_0 = arith.constant 0 : i32
    return %arg0, %c0_i32 : i32, i32
  }
  func.func @transform_1(%arg0: i32) -> (i32, i32) {
    %c0_i32 = arith.constant 0 : i32
    %c0_i32_0 = arith.constant 0 : i32
    %c0_i32_1 = arith.constant 0 : i32
    return %c0_i32, %c0_i32_0 : i32, i32
  }
  func.func @transform_2(%arg0: i32) -> (i32, i32) {
    %c0_i32 = arith.constant 0 : i32
    %c0_i32_0 = arith.constant 0 : i32
    %c0_i32_1 = arith.constant 0 : i32
    return %c0_i32, %c0_i32_0 : i32, i32
  }
  func.func @transform_3(%arg0: i32) -> (i32, i32) {
    %c0_i32 = arith.constant 0 : i32
    %c0_i32_0 = arith.constant 0 : i32
    %c0_i32_1 = arith.constant 0 : i32
    return %c0_i32, %c0_i32_0 : i32, i32
  }
  func.func @transform_4(%arg0: i32) -> (i32, i32) {
    %c0_i32 = arith.constant 0 : i32
    %c0_i32_0 = arith.constant 0 : i32
    %c0_i32_1 = arith.constant 0 : i32
    return %c0_i32, %c0_i32_0 : i32, i32
  }
  func.func @transform_5(%arg0: i32) -> (i32, i32) {
    %c0_i32 = arith.constant 0 : i32
    %c0_i32_0 = arith.constant 0 : i32
    %c0_i32_1 = arith.constant 0 : i32
    return %c0_i32, %c0_i32_0 : i32, i32
  }
  func.func @transform_6(%arg0: i32) -> (i32, i32) {
    %c0_i32 = arith.constant 0 : i32
    %c0_i32_0 = arith.constant 0 : i32
    %c0_i32_1 = arith.constant 0 : i32
    return %c0_i32, %c0_i32_0 : i32, i32
  }
  func.func @transform_7(%arg0: i32) -> (i32, i32) {
    %c0_i32 = arith.constant 0 : i32
    %c0_i32_0 = arith.constant 0 : i32
    return %arg0, %c0_i32 : i32, i32
  }
}

</mosaic_0001>

<llo_original>
// kernel: convnet_forward.5
$region0: #{convnet_forward.5}
  #allocation0 [shape = 'u32[]', space=smem, size = 0x4, offset = 0x4, fixed_abs, tag = 'smem constant byte address 0x4 - core index']
  #allocation1 [shape = 'u32[144,128]{1,0:T(1,128)}', space=vmem, size = 0x12000, scoped, tag = 'internal scratch']
  %s0 = inlined_call_operand.vmem [shape: bf16[2048,80], index: 0, kind: input, shape index: {}]
  %s1 = inlined_call_operand.vmem [shape: bf16[80,128], index: 1, kind: input, shape index: {}]
  %s2 = inlined_call_operand.vmem [shape: f32[1,128], index: 2, kind: input, shape index: {}]
  %s3 = inlined_call_operand.vmem [shape: f32[2048,128], index: 3, kind: output, shape index: {}]
  %s4 = sld [smem:[#allocation0]]
  $region45: #{convnet_forward.5} parent=0
    _
  %s6 = ssub.s32 1, %s4
  %s7 = scalar_select 0, %s6, %s4
  loop: start=0, step=1, limit=6
  $region2: #{convnet_forward.5} parent=0 // loop_pre_header
    _
  $region3: #{convnet_forward.5} parent=0 // loop_header
    %s9 = sphi 0, %s13
    %p10 = scmp.ge.s32.totalorder %s9, 6
    %s19 = sphi 0, %s21
    %s22 = sphi 0, %s19
    %s23 = sphi 0, %s22
    %s39 = sphi 0, %s23
    %s43 = sphi 0, %s43
    %s45 = sphi 0, %s43
    %s46 = sphi 0, %s45
    %s60 = sphi 0, %s46
    %s64 = sphi 0, %s64
    %s66 = sphi 0, %s64
    %s67 = sphi 0, %s66
    %s81 = sphi 0, %s67
    %s87 = sphi 0, %s89
    %s90 = sphi 0, %s87
    %s91 = sphi 0, %s90
    %s107 = sphi 0, %s91
  $region4: #{convnet_forward.5} parent=0 // loop_header_branch
    %12 = sbr.rel (%p10) target = $region8
  $region5: #{convnet_forward.5} parent=0 // loop_body
    %s14 = ssub.s32 %s9, 1
    %s15 = ssub.s32 %s9, 2
    %s16 = sadd.s32 %s9, 1
    %s17 = ssub.s32 %s9, %s16
    %p18 = scmp.eq.s32.totalorder %s17, 0
    %s20 = sadd.s32 %s19, 1
    %s21 = scalar_select %p18, %s19, %s20
    %p24 = pneg %p18
    %p25 = scmp.eq.s32.totalorder %s9, 3
    %p26 = por %p24, %p25
    %p27 = scmp.ne.s32.totalorder %s19, %s22
    %p28 = scmp.eq.s32.totalorder %s9, 0
    %p29 = por %p27, %p28
    %p30 = scmp.ne.s32.totalorder %s19, %s22
    %p31 = scmp.eq.s32.totalorder %s14, 3
    %p32 = por %p30, %p31
    %p33 = scmp.ne.s32.totalorder %s22, %s23
    %p34 = scmp.eq.s32.totalorder %s14, 0
    %p35 = por %p33, %p34
    %p36 = scmp.ne.s32.totalorder %s22, %s23
    %p37 = scmp.eq.s32.totalorder %s15, 3
    %p38 = por %p36, %p37
    %p40 = scmp.ne.s32.totalorder %s23, %s39
    %p41 = scmp.eq.s32.totalorder %s15, 0
    %p42 = por %p40, %p41
    %s44 = sadd.s32 %s43, 1
    %p47 = scmp.eq.s32.totalorder %s9, 3
    %p48 = scmp.ne.s32.totalorder %s43, %s45
    %p49 = scmp.eq.s32.totalorder %s9, 0
    %p50 = por %p48, %p49
    %p51 = scmp.ne.s32.totalorder %s43, %s45
    %p52 = scmp.eq.s32.totalorder %s14, 3
    %p53 = por %p51, %p52
    %p54 = scmp.ne.s32.totalorder %s45, %s46
    %p55 = scmp.eq.s32.totalorder %s14, 0
    %p56 = por %p54, %p55
    %p57 = scmp.ne.s32.totalorder %s45, %s46
    %p58 = scmp.eq.s32.totalorder %s15, 3
    %p59 = por %p57, %p58
    %p61 = scmp.ne.s32.totalorder %s46, %s60
    %p62 = scmp.eq.s32.totalorder %s15, 0
    %p63 = por %p61, %p62
    %s65 = sadd.s32 %s64, 1
    %p68 = scmp.eq.s32.totalorder %s9, 3
    %p69 = scmp.ne.s32.totalorder %s64, %s66
    %p70 = scmp.eq.s32.totalorder %s9, 0
    %p71 = por %p69, %p70
    %p72 = scmp.ne.s32.totalorder %s64, %s66
    %p73 = scmp.eq.s32.totalorder %s14, 3
    %p74 = por %p72, %p73
    %p75 = scmp.ne.s32.totalorder %s66, %s67
    %p76 = scmp.eq.s32.totalorder %s14, 0
    %p77 = por %p75, %p76
    %p78 = scmp.ne.s32.totalorder %s66, %s67
    %p79 = scmp.eq.s32.totalorder %s15, 3
    %p80 = por %p78, %p79
    %p82 = scmp.ne.s32.totalorder %s67, %s81
    %p83 = scmp.eq.s32.totalorder %s15, 0
    %p84 = por %p82, %p83
    %s85 = ssub.s32 %s9, %s16
    %p86 = scmp.eq.s32.totalorder %s85, 0
    %s88 = sadd.s32 %s87, 1
    %s89 = scalar_select %p86, %s87, %s88
    %p92 = pneg %p86
    %p93 = scmp.eq.s32.totalorder %s9, 3
    %p94 = por %p92, %p93
    %p95 = scmp.ne.s32.totalorder %s87, %s90
    %p96 = scmp.eq.s32.totalorder %s9, 0
    %p97 = por %p95, %p96
    %p98 = scmp.ne.s32.totalorder %s87, %s90
    %p99 = scmp.eq.s32.totalorder %s14, 3
    %p100 = por %p98, %p99
    %p101 = scmp.ne.s32.totalorder %s90, %s91
    %p102 = scmp.eq.s32.totalorder %s14, 0
    %p103 = por %p101, %p102
    %p104 = scmp.ne.s32.totalorder %s90, %s91
    %p105 = scmp.eq.s32.totalorder %s15, 3
    %p106 = por %p104, %p105
    %p108 = scmp.ne.s32.totalorder %s91, %s107
    %p109 = scmp.eq.s32.totalorder %s15, 0
    %p110 = por %p108, %p109
    %p111 = scmp.le.s32.totalorder 1, %s9
    %p112 = scmp.lt.s32.totalorder %s9, 5
    %p113 = pnand %p111, %p112
    %p114 = pneg %p113
    // Predicated region
    $region9: #{convnet_forward.5} parent=5 // pred_check
      _
    $region10: #{convnet_forward.5} parent=5 // pred_check_branch
      %116 = sbr.rel (%p113) target = $region12
    $region11: #{convnet_forward.5} parent=5 // pred_region
      %s117 = ssub.s32 %s9, 1
      // Predicated region
      $region13: #{convnet_forward.5} parent=11 // pred_check
        %p118 = pneg %p56
      $region14: #{convnet_forward.5} parent=11 // pred_check_branch
        %120 = sbr.rel (%p118) target = $region16
      $region15: #{convnet_forward.5} parent=11 // pred_region
        _
      $region16: #{convnet_forward.5} parent=11 // pred_fallthru
        _
      // Predicated region
      $region17: #{convnet_forward.5} parent=11 // pred_check
        %p121 = pneg %p77
      $region18: #{convnet_forward.5} parent=11 // pred_check_branch
        %123 = sbr.rel (%p121) target = $region20
      $region19: #{convnet_forward.5} parent=11 // pred_region
        _
      $region20: #{convnet_forward.5} parent=11 // pred_fallthru
        _
    $region12: #{convnet_forward.5} parent=5 // pred_fallthru
      _
    %p124 = scmp.lt.s32.totalorder %s9, 4
    // Predicated region
    $region21: #{convnet_forward.5} parent=5 // pred_check
      %p125 = pneg %p124
    $region22: #{convnet_forward.5} parent=5 // pred_check_branch
      %127 = sbr.rel (%p125) target = $region24
    $region23: #{convnet_forward.5} parent=5 // pred_region
      // Predicated region
      $region25: #{convnet_forward.5} parent=23 // pred_check
        %p128 = pneg %p29
      $region26: #{convnet_forward.5} parent=23 // pred_check_branch
        %130 = sbr.rel (%p128) target = $region28
      $region27: #{convnet_forward.5} parent=23 // pred_region
        %s131 = smul.u32 64, %s9
        %p132 = scmp.lt.s32.totalorder %s131, 255
        %s133 = scalar_select %p132, %s131, 255
        %s134 = smul.addr %s133, 4
        %s135 = scalar_lea.vmem %s0, %s134
        %s136 = smul.u32 64, %s9
      $region28: #{convnet_forward.5} parent=23 // pred_fallthru
        _
    $region24: #{convnet_forward.5} parent=5 // pred_fallthru
      _
    %p137 = scmp.le.s32.totalorder 1, %s9
    %p138 = scmp.lt.s32.totalorder %s9, 5
    %p139 = pnand %p137, %p138
    %p140 = pneg %p139
    // Predicated region
    $region29: #{convnet_forward.5} parent=5 // pred_check
      _
    $region30: #{convnet_forward.5} parent=5 // pred_check_branch
      %142 = sbr.rel (%p139) target = $region32
    $region31: #{convnet_forward.5} parent=5 // pred_region
      %s143 = ssub.s32 %s9, 1
      %s144 = smul.u32 64, %s14
      %p145 = scmp.lt.s32.totalorder %s144, 255
      %s146 = scalar_select %p145, %s144, 255
      %s147 = smul.addr %s146, 4
      %s148 = scalar_lea.vmem %s0, %s147
      %p149 = pneg %p35
      %p150 = pneg %p32
      %p151 = pneg %p56
      %p152 = pneg %p53
      %p153 = pneg %p77
      %p154 = pneg %p74
      %p155 = pneg %p103
      %p156 = pneg %p100
      %s157 = smul.u32 64, %s14
      %p158 = scmp.lt.s32.totalorder %s157, 255
      %s159 = scalar_select %p158, %s157, 255
      %s160 = smul.addr %s159, 8
      %s161 = scalar_lea.vmem %s3, %s160
      %s162 = smul.u32 64, %s14
      %p163 = scmp.lt.s32.totalorder %s162, 255
      %s164 = scalar_select %p163, %s162, 255
      %s165 = smul.addr %s164, 4
      %s166 = scalar_lea.vmem %s0, %s165
      %s167 = smul.u32 64, %s14
      %s168 = smul.u32 64, %s14
      %p169 = scmp.lt.s32.totalorder %s168, 255
      %s170 = scalar_select %p169, %s168, 255
      %s171 = smul.addr %s170, 8
      %s172 = scalar_lea.vmem %s3, %s171
      %s173 = smul.u32 64, %s14
      %v175 = vld [vmem:[%s166] sm:$0xf]
      %v176 = vld [vmem:[%s166 + $0x4] sm:$0xf]
      %v177 = vld [vmem:[%s166 + $0x8] sm:$0xf]
      %v178 = vld [vmem:[%s166 + $0xc] sm:$0xf]
      %v179 = vld [vmem:[%s166 + $0x10] sm:$0xf]
      %v180 = vld [vmem:[%s166 + $0x14] sm:$0xf]
      %v181 = vld [vmem:[%s166 + $0x18] sm:$0xf]
      %v182 = vld [vmem:[%s166 + $0x1c] sm:$0xf]
      %v183 = vld [vmem:[%s166 + $0x20] sm:$0xf]
      %v184 = vld [vmem:[%s166 + $0x24] sm:$0xf]
      %v185 = vld [vmem:[%s166 + $0x28] sm:$0xf]
      %v186 = vld [vmem:[%s166 + $0x2c] sm:$0xf]
      %v187 = vld [vmem:[%s166 + $0x30] sm:$0xf]
      %v188 = vld [vmem:[%s166 + $0x34] sm:$0xf]
      %v189 = vld [vmem:[%s166 + $0x38] sm:$0xf]
      %v190 = vld [vmem:[%s166 + $0x3c] sm:$0xf]
      %v191 = vld [vmem:[%s166 + $0x40] sm:$0xf]
      %v192 = vld [vmem:[%s166 + $0x44] sm:$0xf]
      %v193 = vld [vmem:[%s166 + $0x48] sm:$0xf]
      %v194 = vld [vmem:[%s166 + $0x4c] sm:$0xf]
      %v195 = vld [vmem:[%s166 + $0x50] sm:$0xf]
      %v196 = vld [vmem:[%s166 + $0x54] sm:$0xf]
      %v197 = vld [vmem:[%s166 + $0x58] sm:$0xf]
      %v198 = vld [vmem:[%s166 + $0x5c] sm:$0xf]
      %v199 = vld [vmem:[%s166 + $0x60] sm:$0xf]
      %v200 = vld [vmem:[%s166 + $0x64] sm:$0xf]
      %v201 = vld [vmem:[%s166 + $0x68] sm:$0xf]
      %v202 = vld [vmem:[%s166 + $0x6c] sm:$0xf]
      %v203 = vld [vmem:[%s166 + $0x70] sm:$0xf]
      %v204 = vld [vmem:[%s166 + $0x74] sm:$0xf]
      %v205 = vld [vmem:[%s166 + $0x78] sm:$0xf]
      %v206 = vld [vmem:[%s166 + $0x7c] sm:$0xf]
      %v207 = vld [vmem:[%s166 + $0x80] sm:$0xf]
      %v208 = vld [vmem:[%s166 + $0x84] sm:$0xf]
      %v209 = vld [vmem:[%s166 + $0x88] sm:$0xf]
      %v210 = vld [vmem:[%s166 + $0x8c] sm:$0xf]
      %v211 = vld [vmem:[%s166 + $0x90] sm:$0xf]
      %v212 = vld [vmem:[%s166 + $0x94] sm:$0xf]
      %v213 = vld [vmem:[%s166 + $0x98] sm:$0xf]
      %v214 = vld [vmem:[%s166 + $0x9c] sm:$0xf]
      %v215 = vld [vmem:[%s166 + $0xa0] sm:$0xf]
      %v216 = vld [vmem:[%s166 + $0xa4] sm:$0xf]
      %v217 = vld [vmem:[%s166 + $0xa8] sm:$0xf]
      %v218 = vld [vmem:[%s166 + $0xac] sm:$0xf]
      %v219 = vld [vmem:[%s166 + $0xb0] sm:$0xf]
      %v220 = vld [vmem:[%s166 + $0xb4] sm:$0xf]
      %v221 = vld [vmem:[%s166 + $0xb8] sm:$0xf]
      %v222 = vld [vmem:[%s166 + $0xbc] sm:$0xf]
      %v223 = vld [vmem:[%s166 + $0xc0] sm:$0xf]
      %v224 = vld [vmem:[%s166 + $0xc4] sm:$0xf]
      %v225 = vld [vmem:[%s166 + $0xc8] sm:$0xf]
      %v226 = vld [vmem:[%s166 + $0xcc] sm:$0xf]
      %v227 = vld [vmem:[%s166 + $0xd0] sm:$0xf]
      %v228 = vld [vmem:[%s166 + $0xd4] sm:$0xf]
      %v229 = vld [vmem:[%s166 + $0xd8] sm:$0xf]
      %v230 = vld [vmem:[%s166 + $0xdc] sm:$0xf]
      %v231 = vld [vmem:[%s166 + $0xe0] sm:$0xf]
      %v232 = vld [vmem:[%s166 + $0xe4] sm:$0xf]
      %v233 = vld [vmem:[%s166 + $0xe8] sm:$0xf]
      %v234 = vld [vmem:[%s166 + $0xec] sm:$0xf]
      %v235 = vld [vmem:[%s166 + $0xf0] sm:$0xf]
      %v236 = vld [vmem:[%s166 + $0xf4] sm:$0xf]
      %v237 = vld [vmem:[%s166 + $0xf8] sm:$0xf]
      %v238 = vld [vmem:[%s166 + $0xfc] sm:$0xf]
      %v239 = vld [vmem:[%s1] sm:$0xf]
      %v240 = vld [vmem:[%s1 + $0x4] sm:$0xf]
      %v241 = vld [vmem:[%s1 + $0x8] sm:$0xf]
      %v242 = vld [vmem:[%s1 + $0xc] sm:$0xf]
      %v243 = vld [vmem:[%s1 + $0x10] sm:$0xf]
      %v244 = vld [vmem:[%s1 + $0x14] sm:$0xf]
      %v245 = vld [vmem:[%s1 + $0x18] sm:$0xf]
      %v246 = vld [vmem:[%s1 + $0x1c] sm:$0xf]
      %v247 = vld [vmem:[%s1 + $0x20] sm:$0xf]
      %v248 = vld [vmem:[%s1 + $0x24] sm:$0xf]
      %v249 = vld [vmem:[%s2] sm:$0x1]
      %v251 = vlaneseq
      %v252 = vshrl.u32 %v251, 7
      %v253 = vsub.s32 0, %v252
      %v254 = vrot.slane %v249, %v253
      %v320 = vunpack.c.l.b16 %v175
      %v321 = vunpack.c.l.b16 %v176
      %v322 = vunpack.c.l.b16 %v177
      %v323 = vunpack.c.l.b16 %v178
      %v324 = vunpack.c.l.b16 %v179
      %v325 = vunpack.c.l.b16 %v180
      %v326 = vunpack.c.l.b16 %v181
      %v327 = vunpack.c.l.b16 %v182
      %v328 = vunpack.c.l.b16 %v183
      %v329 = vunpack.c.l.b16 %v184
      %v330 = vunpack.c.l.b16 %v185
      %v331 = vunpack.c.l.b16 %v186
      %v332 = vunpack.c.l.b16 %v187
      %v333 = vunpack.c.l.b16 %v188
      %v334 = vunpack.c.l.b16 %v189
      %v335 = vunpack.c.l.b16 %v190
      %v336 = vunpack.c.l.b16 %v191
      %v337 = vunpack.c.l.b16 %v192
      %v338 = vunpack.c.l.b16 %v193
      %v339 = vunpack.c.l.b16 %v194
      %v340 = vunpack.c.l.b16 %v195
      %v341 = vunpack.c.l.b16 %v196
      %v342 = vunpack.c.l.b16 %v197
      %v343 = vunpack.c.l.b16 %v198
      %v344 = vunpack.c.l.b16 %v199
      %v345 = vunpack.c.l.b16 %v200
      %v346 = vunpack.c.l.b16 %v201
      %v347 = vunpack.c.l.b16 %v202
      %v348 = vunpack.c.l.b16 %v203
      %v349 = vunpack.c.l.b16 %v204
      %v350 = vunpack.c.l.b16 %v205
      %v351 = vunpack.c.l.b16 %v206
      %v352 = vunpack.c.l.b16 %v207
      %v353 = vunpack.c.l.b16 %v208
      %v354 = vunpack.c.l.b16 %v209
      %v355 = vunpack.c.l.b16 %v210
      %v356 = vunpack.c.l.b16 %v211
      %v357 = vunpack.c.l.b16 %v212
      %v358 = vunpack.c.l.b16 %v213
      %v359 = vunpack.c.l.b16 %v214
      %v360 = vunpack.c.l.b16 %v215
      %v361 = vunpack.c.l.b16 %v216
      %v362 = vunpack.c.l.b16 %v217
      %v363 = vunpack.c.l.b16 %v218
      %v364 = vunpack.c.l.b16 %v219
      %v365 = vunpack.c.l.b16 %v220
      %v366 = vunpack.c.l.b16 %v221
      %v367 = vunpack.c.l.b16 %v222
      %v368 = vunpack.c.l.b16 %v223
      %v369 = vunpack.c.l.b16 %v224
      %v370 = vunpack.c.l.b16 %v225
      %v371 = vunpack.c.l.b16 %v226
      %v372 = vunpack.c.l.b16 %v227
      %v373 = vunpack.c.l.b16 %v228
      %v374 = vunpack.c.l.b16 %v229
      %v375 = vunpack.c.l.b16 %v230
      %v376 = vunpack.c.l.b16 %v231
      %v377 = vunpack.c.l.b16 %v232
      %v378 = vunpack.c.l.b16 %v233
      %v379 = vunpack.c.l.b16 %v234
      %v380 = vunpack.c.l.b16 %v235
      %v381 = vunpack.c.l.b16 %v236
      %v382 = vunpack.c.l.b16 %v237
      %v383 = vunpack.c.l.b16 %v238
      %v384 = vpack.c.b16 %v321, %v320
      %v385 = vpack.c.b16 %v323, %v322
      %v386 = vpack.c.b16 %v325, %v324
      %v387 = vpack.c.b16 %v327, %v326
      %v388 = vpack.c.b16 %v329, %v328
      %v389 = vpack.c.b16 %v331, %v330
      %v390 = vpack.c.b16 %v333, %v332
      %v391 = vpack.c.b16 %v335, %v334
      %v392 = vpack.c.b16 %v337, %v336
      %v393 = vpack.c.b16 %v339, %v338
      %v394 = vpack.c.b16 %v341, %v340
      %v395 = vpack.c.b16 %v343, %v342
      %v396 = vpack.c.b16 %v345, %v344
      %v397 = vpack.c.b16 %v347, %v346
      %v398 = vpack.c.b16 %v349, %v348
      %v399 = vpack.c.b16 %v351, %v350
      %v400 = vpack.c.b16 %v353, %v352
      %v401 = vpack.c.b16 %v355, %v354
      %v402 = vpack.c.b16 %v357, %v356
      %v403 = vpack.c.b16 %v359, %v358
      %v404 = vpack.c.b16 %v361, %v360
      %v405 = vpack.c.b16 %v363, %v362
      %v406 = vpack.c.b16 %v365, %v364
      %v407 = vpack.c.b16 %v367, %v366
      %v408 = vpack.c.b16 %v369, %v368
      %v409 = vpack.c.b16 %v371, %v370
      %v410 = vpack.c.b16 %v373, %v372
      %v411 = vpack.c.b16 %v375, %v374
      %v412 = vpack.c.b16 %v377, %v376
      %v413 = vpack.c.b16 %v379, %v378
      %v414 = vpack.c.b16 %v381, %v380
      %v415 = vpack.c.b16 %v383, %v382
      %v426 = vunpack.c.l.b16 %v239
      %v427 = vunpack.c.l.b16 %v240
      %v428 = vunpack.c.l.b16 %v241
      %v429 = vunpack.c.l.b16 %v242
      %v430 = vunpack.c.l.b16 %v243
      %v431 = vunpack.c.l.b16 %v244
      %v432 = vunpack.c.l.b16 %v245
      %v433 = vunpack.c.l.b16 %v246
      %v434 = vunpack.c.l.b16 %v247
      %v435 = vunpack.c.l.b16 %v248
      %v436 = vpack.c.b16 %v427, %v426
      %v437 = vpack.c.b16 %v429, %v428
      %v438 = vpack.c.b16 %v431, %v430
      %v439 = vpack.c.b16 %v433, %v432
      %v440 = vpack.c.b16 %v435, %v434
      %vm446 = vcmask 654336
      %v448 = vsel %vm446, %v384, 0
      %v451 = vsel %vm446, %v385, 0
      %v454 = vsel %vm446, %v386, 0
      %v457 = vsel %vm446, %v387, 0
      %v460 = vsel %vm446, %v388, 0
      %v463 = vsel %vm446, %v389, 0
      %v466 = vsel %vm446, %v390, 0
      %v469 = vsel %vm446, %v391, 0
      %v472 = vsel %vm446, %v392, 0
      %v475 = vsel %vm446, %v393, 0
      %v478 = vsel %vm446, %v394, 0
      %v481 = vsel %vm446, %v395, 0
      %v484 = vsel %vm446, %v396, 0
      %v487 = vsel %vm446, %v397, 0
      %v490 = vsel %vm446, %v398, 0
      %v493 = vsel %vm446, %v399, 0
      %v496 = vsel %vm446, %v400, 0
      %v499 = vsel %vm446, %v401, 0
      %v502 = vsel %vm446, %v402, 0
      %v505 = vsel %vm446, %v403, 0
      %v508 = vsel %vm446, %v404, 0
      %v511 = vsel %vm446, %v405, 0
      %v514 = vsel %vm446, %v406, 0
      %v517 = vsel %vm446, %v407, 0
      %v520 = vsel %vm446, %v408, 0
      %v523 = vsel %vm446, %v409, 0
      %v526 = vsel %vm446, %v410, 0
      %v529 = vsel %vm446, %v411, 0
      %v532 = vsel %vm446, %v412, 0
      %v535 = vsel %vm446, %v413, 0
      %v538 = vsel %vm446, %v414, 0
      %v541 = vsel %vm446, %v415, 0
      %543 = vmatprep.subr.bf16.mxu0 0
      %544 = vmatpush1.bf16.msra.mxu0 %v436
      %545 = vmatprep.subr.bf16.mxu0 0
      %546 = vmatpush1.bf16.msra.mxu0 %v437
      %547 = vmatprep.subr.bf16.mxu0 0
      %548 = vmatpush1.bf16.msra.mxu0 %v438
      %549 = vmatprep.subr.bf16.mxu0 0
      %550 = vmatpush1.bf16.msra.mxu0 %v439
      %551 = vmatprep.subr.bf16.mxu0 0
      %552 = vmatpush1.bf16.msra.mxu0 %v440
      %553 = vmatprep.subr.bf16.mxu0 0
      %554 = vmatpush1.bf16.msra.mxu0 0
      %555 = vmatprep.subr.bf16.mxu0 0
      %556 = vmatpush1.bf16.msra.mxu0 0
      %557 = vmatprep.subr.bf16.mxu0 0
      %558 = vmatpush1.bf16.msra.mxu0 0
      %559 = vmatprep.subr.bf16.mxu0 0
      %560 = vmatpush1.bf16.msra.mxu0 0
      %561 = vmatprep.subr.bf16.mxu0 0
      %562 = vmatpush1.bf16.msra.mxu0 0
      %563 = vmatprep.subr.bf16.mxu0 0
      %564 = vmatpush1.bf16.msra.mxu0 0
      %565 = vmatprep.subr.bf16.mxu0 0
      %566 = vmatpush1.bf16.msra.mxu0 0
      %567 = vmatprep.subr.bf16.mxu0 0
      %568 = vmatpush1.bf16.msra.mxu0 0
      %569 = vmatprep.subr.bf16.mxu0 0
      %570 = vmatpush1.bf16.msra.mxu0 0
      %571 = vmatprep.subr.bf16.mxu0 0
      %572 = vmatpush1.bf16.msra.mxu0 0
      %573 = vmatprep.subr.bf16.mxu0 0
      %574 = vmatpush1.bf16.msra.mxu0 0
      %575 = vmatprep.mubr.bf16.mxu0 0
      %576 = vmatmul.mubr.bf16.gmra.mrb[0].mxu0 %v448
      %v577 = vpop.f32.mrb[0].mxu0
      %v578 = vadd.f32 %v254, %v577
      %v579 = vpop.f32.mrb[0].mxu0
      %v580 = vpop.f32.mrb[0].mxu0
      %v581 = vadd.f32 %v254, %v580
      %v582 = vpop.f32.mrb[0].mxu0
      %583 = vmatprep.mubr.bf16.mxu0 0
      %584 = vmatmul.mubr.bf16.gmra.mrb[0].mxu0 %v451
      %v585 = vpop.f32.mrb[0].mxu0
      %v586 = vadd.f32 %v254, %v585
      %v587 = vpop.f32.mrb[0].mxu0
      %v588 = vpop.f32.mrb[0].mxu0
      %v589 = vadd.f32 %v254, %v588
      %v590 = vpop.f32.mrb[0].mxu0
      %591 = vmatprep.mubr.bf16.mxu0 0
      %592 = vmatmul.mubr.bf16.gmra.mrb[0].mxu0 %v454
      %v593 = vpop.f32.mrb[0].mxu0
      %v594 = vadd.f32 %v254, %v593
      %v595 = vpop.f32.mrb[0].mxu0
      %v596 = vpop.f32.mrb[0].mxu0
      %v597 = vadd.f32 %v254, %v596
      %v598 = vpop.f32.mrb[0].mxu0
      %599 = vmatprep.mubr.bf16.mxu0 0
      %600 = vmatmul.mubr.bf16.gmra.mrb[0].mxu0 %v457
      %v601 = vpop.f32.mrb[0].mxu0
      %v602 = vadd.f32 %v254, %v601
      %v603 = vpop.f32.mrb[0].mxu0
      %v604 = vpop.f32.mrb[0].mxu0
      %v605 = vadd.f32 %v254, %v604
      %v606 = vpop.f32.mrb[0].mxu0
      %607 = vmatprep.mubr.bf16.mxu0 0
      %608 = vmatmul.mubr.bf16.gmra.mrb[0].mxu0 %v460
      %v609 = vpop.f32.mrb[0].mxu0
      %v610 = vadd.f32 %v254, %v609
      %v611 = vpop.f32.mrb[0].mxu0
      %v612 = vpop.f32.mrb[0].mxu0
      %v613 = vadd.f32 %v254, %v612
      %v614 = vpop.f32.mrb[0].mxu0
      %615 = vmatprep.mubr.bf16.mxu0 0
      %616 = vmatmul.mubr.bf16.gmra.mrb[0].mxu0 %v463
      %v617 = vpop.f32.mrb[0].mxu0
      %v618 = vadd.f32 %v254, %v617
      %v619 = vpop.f32.mrb[0].mxu0
      %v620 = vpop.f32.mrb[0].mxu0
      %v621 = vadd.f32 %v254, %v620
      %v622 = vpop.f32.mrb[0].mxu0
      %623 = vmatprep.mubr.bf16.mxu0 0
      %624 = vmatmul.mubr.bf16.gmra.mrb[0].mxu0 %v466
      %v625 = vpop.f32.mrb[0].mxu0
      %v626 = vadd.f32 %v254, %v625
      %v627 = vpop.f32.mrb[0].mxu0
      %v628 = vpop.f32.mrb[0].mxu0
      %v629 = vadd.f32 %v254, %v628
      %v630 = vpop.f32.mrb[0].mxu0
      %631 = vmatprep.mubr.bf16.mxu0 0
      %632 = vmatmul.mubr.bf16.gmra.mrb[0].mxu0 %v469
      %v633 = vpop.f32.mrb[0].mxu0
      %v634 = vadd.f32 %v254, %v633
      %v635 = vpop.f32.mrb[0].mxu0
      %v636 = vpop.f32.mrb[0].mxu0
      %v637 = vadd.f32 %v254, %v636
      %v638 = vpop.f32.mrb[0].mxu0
      %639 = vmatprep.mubr.bf16.mxu0 0
      %640 = vmatmul.mubr.bf16.gmra.mrb[0].mxu0 %v472
      %v641 = vpop.f32.mrb[0].mxu0
      %v642 = vadd.f32 %v254, %v641
      %v643 = vpop.f32.mrb[0].mxu0
      %v644 = vpop.f32.mrb[0].mxu0
      %v645 = vadd.f32 %v254, %v644
      %v646 = vpop.f32.mrb[0].mxu0
      %647 = vmatprep.mubr.bf16.mxu0 0
      %648 = vmatmul.mubr.bf16.gmra.mrb[0].mxu0 %v475
      %v649 = vpop.f32.mrb[0].mxu0
      %v650 = vadd.f32 %v254, %v649
      %v651 = vpop.f32.mrb[0].mxu0
      %v652 = vpop.f32.mrb[0].mxu0
      %v653 = vadd.f32 %v254, %v652
      %v654 = vpop.f32.mrb[0].mxu0
      %655 = vmatprep.mubr.bf16.mxu0 0
      %656 = vmatmul.mubr.bf16.gmra.mrb[0].mxu0 %v478
      %v657 = vpop.f32.mrb[0].mxu0
      %v658 = vadd.f32 %v254, %v657
      %v659 = vpop.f32.mrb[0].mxu0
      %v660 = vpop.f32.mrb[0].mxu0
      %v661 = vadd.f32 %v254, %v660
      %v662 = vpop.f32.mrb[0].mxu0
      %663 = vmatprep.mubr.bf16.mxu0 0
      %664 = vmatmul.mubr.bf16.gmra.mrb[0].mxu0 %v481
      %v665 = vpop.f32.mrb[0].mxu0
      %v666 = vadd.f32 %v254, %v665
      %v667 = vpop.f32.mrb[0].mxu0
      %v668 = vpop.f32.mrb[0].mxu0
      %v669 = vadd.f32 %v254, %v668
      %v670 = vpop.f32.mrb[0].mxu0
      %671 = vmatprep.mubr.bf16.mxu0 0
      %672 = vmatmul.mubr.bf16.gmra.mrb[0].mxu0 %v484
      %v673 = vpop.f32.mrb[0].mxu0
      %v674 = vadd.f32 %v254, %v673
      %v675 = vpop.f32.mrb[0].mxu0
      %v676 = vpop.f32.mrb[0].mxu0
      %v677 = vadd.f32 %v254, %v676
      %v678 = vpop.f32.mrb[0].mxu0
      %679 = vmatprep.mubr.bf16.mxu0 0
      %680 = vmatmul.mubr.bf16.gmra.mrb[0].mxu0 %v487
      %v681 = vpop.f32.mrb[0].mxu0
      %v682 = vadd.f32 %v254, %v681
      %v683 = vpop.f32.mrb[0].mxu0
      %v684 = vpop.f32.mrb[0].mxu0
      %v685 = vadd.f32 %v254, %v684
      %v686 = vpop.f32.mrb[0].mxu0
      %687 = vmatprep.mubr.bf16.mxu0 0
      %688 = vmatmul.mubr.bf16.gmra.mrb[0].mxu0 %v490
      %v689 = vpop.f32.mrb[0].mxu0
      %v690 = vadd.f32 %v254, %v689
      %v691 = vpop.f32.mrb[0].mxu0
      %v692 = vpop.f32.mrb[0].mxu0
      %v693 = vadd.f32 %v254, %v692
      %v694 = vpop.f32.mrb[0].mxu0
      %695 = vmatprep.mubr.bf16.mxu0 0
      %696 = vmatmul.mubr.bf16.gmra.mrb[0].mxu0 %v493
      %v697 = vpop.f32.mrb[0].mxu0
      %v698 = vadd.f32 %v254, %v697
      %v699 = vpop.f32.mrb[0].mxu0
      %v700 = vpop.f32.mrb[0].mxu0
      %v701 = vadd.f32 %v254, %v700
      %v702 = vpop.f32.mrb[0].mxu0
      %703 = vmatprep.mubr.bf16.mxu0 0
      %704 = vmatmul.mubr.bf16.gmra.mrb[0].mxu0 %v496
      %v705 = vpop.f32.mrb[0].mxu0
      %v706 = vadd.f32 %v254, %v705
      %v707 = vpop.f32.mrb[0].mxu0
      %v708 = vpop.f32.mrb[0].mxu0
      %v709 = vadd.f32 %v254, %v708
      %v710 = vpop.f32.mrb[0].mxu0
      %711 = vmatprep.mubr.bf16.mxu0 0
      %712 = vmatmul.mubr.bf16.gmra.mrb[0].mxu0 %v499
      %v713 = vpop.f32.mrb[0].mxu0
      %v714 = vadd.f32 %v254, %v713
      %v715 = vpop.f32.mrb[0].mxu0
      %v716 = vpop.f32.mrb[0].mxu0
      %v717 = vadd.f32 %v254, %v716
      %v718 = vpop.f32.mrb[0].mxu0
      %719 = vmatprep.mubr.bf16.mxu0 0
      %720 = vmatmul.mubr.bf16.gmra.mrb[0].mxu0 %v502
      %v721 = vpop.f32.mrb[0].mxu0
      %v722 = vadd.f32 %v254, %v721
      %v723 = vpop.f32.mrb[0].mxu0
      %v724 = vpop.f32.mrb[0].mxu0
      %v725 = vadd.f32 %v254, %v724
      %v726 = vpop.f32.mrb[0].mxu0
      %727 = vmatprep.mubr.bf16.mxu0 0
      %728 = vmatmul.mubr.bf16.gmra.mrb[0].mxu0 %v505
      %v729 = vpop.f32.mrb[0].mxu0
      %v730 = vadd.f32 %v254, %v729
      %v731 = vpop.f32.mrb[0].mxu0
      %v732 = vpop.f32.mrb[0].mxu0
      %v733 = vadd.f32 %v254, %v732
      %v734 = vpop.f32.mrb[0].mxu0
      %735 = vmatprep.mubr.bf16.mxu0 0
      %736 = vmatmul.mubr.bf16.gmra.mrb[0].mxu0 %v508
      %v737 = vpop.f32.mrb[0].mxu0
      %v738 = vadd.f32 %v254, %v737
      %v739 = vpop.f32.mrb[0].mxu0
      %v740 = vpop.f32.mrb[0].mxu0
      %v741 = vadd.f32 %v254, %v740
      %v742 = vpop.f32.mrb[0].mxu0
      %743 = vmatprep.mubr.bf16.mxu0 0
      %744 = vmatmul.mubr.bf16.gmra.mrb[0].mxu0 %v511
      %v745 = vpop.f32.mrb[0].mxu0
      %v746 = vadd.f32 %v254, %v745
      %v747 = vpop.f32.mrb[0].mxu0
      %v748 = vpop.f32.mrb[0].mxu0
      %v749 = vadd.f32 %v254, %v748
      %v750 = vpop.f32.mrb[0].mxu0
      %751 = vmatprep.mubr.bf16.mxu0 0
      %752 = vmatmul.mubr.bf16.gmra.mrb[0].mxu0 %v514
      %v753 = vpop.f32.mrb[0].mxu0
      %v754 = vadd.f32 %v254, %v753
      %v755 = vpop.f32.mrb[0].mxu0
      %v756 = vpop.f32.mrb[0].mxu0
      %v757 = vadd.f32 %v254, %v756
      %v758 = vpop.f32.mrb[0].mxu0
      %759 = vmatprep.mubr.bf16.mxu0 0
      %760 = vmatmul.mubr.bf16.gmra.mrb[0].mxu0 %v517
      %v761 = vpop.f32.mrb[0].mxu0
      %v762 = vadd.f32 %v254, %v761
      %v763 = vpop.f32.mrb[0].mxu0
      %v764 = vpop.f32.mrb[0].mxu0
      %v765 = vadd.f32 %v254, %v764
      %v766 = vpop.f32.mrb[0].mxu0
      %767 = vmatprep.mubr.bf16.mxu0 0
      %768 = vmatmul.mubr.bf16.gmra.mrb[0].mxu0 %v520
      %v769 = vpop.f32.mrb[0].mxu0
      %v770 = vadd.f32 %v254, %v769
      %v771 = vpop.f32.mrb[0].mxu0
      %v772 = vpop.f32.mrb[0].mxu0
      %v773 = vadd.f32 %v254, %v772
      %v774 = vpop.f32.mrb[0].mxu0
      %775 = vmatprep.mubr.bf16.mxu0 0
      %776 = vmatmul.mubr.bf16.gmra.mrb[0].mxu0 %v523
      %v777 = vpop.f32.mrb[0].mxu0
      %v778 = vadd.f32 %v254, %v777
      %v779 = vpop.f32.mrb[0].mxu0
      %v780 = vpop.f32.mrb[0].mxu0
      %v781 = vadd.f32 %v254, %v780
      %v782 = vpop.f32.mrb[0].mxu0
      %783 = vmatprep.mubr.bf16.mxu0 0
      %784 = vmatmul.mubr.bf16.gmra.mrb[0].mxu0 %v526
      %v785 = vpop.f32.mrb[0].mxu0
      %v786 = vadd.f32 %v254, %v785
      %v787 = vpop.f32.mrb[0].mxu0
      %v788 = vpop.f32.mrb[0].mxu0
      %v789 = vadd.f32 %v254, %v788
      %v790 = vpop.f32.mrb[0].mxu0
      %791 = vmatprep.mubr.bf16.mxu0 0
      %792 = vmatmul.mubr.bf16.gmra.mrb[0].mxu0 %v529
      %v793 = vpop.f32.mrb[0].mxu0
      %v794 = vadd.f32 %v254, %v793
      %v795 = vpop.f32.mrb[0].mxu0
      %v796 = vpop.f32.mrb[0].mxu0
      %v797 = vadd.f32 %v254, %v796
      %v798 = vpop.f32.mrb[0].mxu0
      %799 = vmatprep.mubr.bf16.mxu0 0
      %800 = vmatmul.mubr.bf16.gmra.mrb[0].mxu0 %v532
      %v801 = vpop.f32.mrb[0].mxu0
      %v802 = vadd.f32 %v254, %v801
      %v803 = vpop.f32.mrb[0].mxu0
      %v804 = vpop.f32.mrb[0].mxu0
      %v805 = vadd.f32 %v254, %v804
      %v806 = vpop.f32.mrb[0].mxu0
      %807 = vmatprep.mubr.bf16.mxu0 0
      %808 = vmatmul.mubr.bf16.gmra.mrb[0].mxu0 %v535
      %v809 = vpop.f32.mrb[0].mxu0
      %v810 = vadd.f32 %v254, %v809
      %v811 = vpop.f32.mrb[0].mxu0
      %v812 = vpop.f32.mrb[0].mxu0
      %v813 = vadd.f32 %v254, %v812
      %v814 = vpop.f32.mrb[0].mxu0
      %815 = vmatprep.mubr.bf16.mxu0 0
      %816 = vmatmul.mubr.bf16.gmra.mrb[0].mxu0 %v538
      %v817 = vpop.f32.mrb[0].mxu0
      %v818 = vadd.f32 %v254, %v817
      %v819 = vpop.f32.mrb[0].mxu0
      %v820 = vpop.f32.mrb[0].mxu0
      %v821 = vadd.f32 %v254, %v820
      %v822 = vpop.f32.mrb[0].mxu0
      %823 = vmatprep.mubr.bf16.mxu0 0
      %824 = vmatmul.mubr.bf16.gmra.mrb[0].mxu0 %v541
      %v825 = vpop.f32.mrb[0].mxu0
      %v826 = vadd.f32 %v254, %v825
      %v827 = vpop.f32.mrb[0].mxu0
      %v828 = vpop.f32.mrb[0].mxu0
      %v829 = vadd.f32 %v254, %v828
      %v830 = vpop.f32.mrb[0].mxu0
      %831 = vdwg.mxu0
      %v832 = vmax.f32 %v578, 0.0
      %v833 = vmax.f32 %v581, 0.0
      %v834 = vmax.f32 %v586, 0.0
      %v835 = vmax.f32 %v589, 0.0
      %v836 = vmax.f32 %v594, 0.0
      %v837 = vmax.f32 %v597, 0.0
      %v838 = vmax.f32 %v602, 0.0
      %v839 = vmax.f32 %v605, 0.0
      %v840 = vmax.f32 %v610, 0.0
      %v841 = vmax.f32 %v613, 0.0
      %v842 = vmax.f32 %v618, 0.0
      %v843 = vmax.f32 %v621, 0.0
      %v844 = vmax.f32 %v626, 0.0
      %v845 = vmax.f32 %v629, 0.0
      %v846 = vmax.f32 %v634, 0.0
      %v847 = vmax.f32 %v637, 0.0
      %v848 = vmax.f32 %v642, 0.0
      %v849 = vmax.f32 %v645, 0.0
      %v850 = vmax.f32 %v650, 0.0
      %v851 = vmax.f32 %v653, 0.0
      %v852 = vmax.f32 %v658, 0.0
      %v853 = vmax.f32 %v661, 0.0
      %v854 = vmax.f32 %v666, 0.0
      %v855 = vmax.f32 %v669, 0.0
      %v856 = vmax.f32 %v674, 0.0
      %v857 = vmax.f32 %v677, 0.0
      %v858 = vmax.f32 %v682, 0.0
      %v859 = vmax.f32 %v685, 0.0
      %v860 = vmax.f32 %v690, 0.0
      %v861 = vmax.f32 %v693, 0.0
      %v862 = vmax.f32 %v698, 0.0
      %v863 = vmax.f32 %v701, 0.0
      %v864 = vmax.f32 %v706, 0.0
      %v865 = vmax.f32 %v709, 0.0
      %v866 = vmax.f32 %v714, 0.0
      %v867 = vmax.f32 %v717, 0.0
      %v868 = vmax.f32 %v722, 0.0
      %v869 = vmax.f32 %v725, 0.0
      %v870 = vmax.f32 %v730, 0.0
      %v871 = vmax.f32 %v733, 0.0
      %v872 = vmax.f32 %v738, 0.0
      %v873 = vmax.f32 %v741, 0.0
      %v874 = vmax.f32 %v746, 0.0
      %v875 = vmax.f32 %v749, 0.0
      %v876 = vmax.f32 %v754, 0.0
      %v877 = vmax.f32 %v757, 0.0
      %v878 = vmax.f32 %v762, 0.0
      %v879 = vmax.f32 %v765, 0.0
      %v880 = vmax.f32 %v770, 0.0
      %v881 = vmax.f32 %v773, 0.0
      %v882 = vmax.f32 %v778, 0.0
      %v883 = vmax.f32 %v781, 0.0
      %v884 = vmax.f32 %v786, 0.0
      %v885 = vmax.f32 %v789, 0.0
      %v886 = vmax.f32 %v794, 0.0
      %v887 = vmax.f32 %v797, 0.0
      %v888 = vmax.f32 %v802, 0.0
      %v889 = vmax.f32 %v805, 0.0
      %v890 = vmax.f32 %v810, 0.0
      %v891 = vmax.f32 %v813, 0.0
      %v892 = vmax.f32 %v818, 0.0
      %v893 = vmax.f32 %v821, 0.0
      %v894 = vmax.f32 %v826, 0.0
      %v895 = vmax.f32 %v829, 0.0
      %896 = vst [vmem:[%s172] sm:$0xff] %v832
      %897 = vst [vmem:[%s172 + $0x8] sm:$0xff] %v833
      %898 = vst [vmem:[%s172 + $0x10] sm:$0xff] %v834
      %899 = vst [vmem:[%s172 + $0x18] sm:$0xff] %v835
      %900 = vst [vmem:[%s172 + $0x20] sm:$0xff] %v836
      %901 = vst [vmem:[%s172 + $0x28] sm:$0xff] %v837
      %902 = vst [vmem:[%s172 + $0x30] sm:$0xff] %v838
      %903 = vst [vmem:[%s172 + $0x38] sm:$0xff] %v839
      %904 = vst [vmem:[%s172 + $0x40] sm:$0xff] %v840
      %905 = vst [vmem:[%s172 + $0x48] sm:$0xff] %v841
      %906 = vst [vmem:[%s172 + $0x50] sm:$0xff] %v842
      %907 = vst [vmem:[%s172 + $0x58] sm:$0xff] %v843
      %908 = vst [vmem:[%s172 + $0x60] sm:$0xff] %v844
      %909 = vst [vmem:[%s172 + $0x68] sm:$0xff] %v845
      %910 = vst [vmem:[%s172 + $0x70] sm:$0xff] %v846
      %911 = vst [vmem:[%s172 + $0x78] sm:$0xff] %v847
      %912 = vst [vmem:[%s172 + $0x80] sm:$0xff] %v848
      %913 = vst [vmem:[%s172 + $0x88] sm:$0xff] %v849
      %914 = vst [vmem:[%s172 + $0x90] sm:$0xff] %v850
      %915 = vst [vmem:[%s172 + $0x98] sm:$0xff] %v851
      %916 = vst [vmem:[%s172 + $0xa0] sm:$0xff] %v852
      %917 = vst [vmem:[%s172 + $0xa8] sm:$0xff] %v853
      %918 = vst [vmem:[%s172 + $0xb0] sm:$0xff] %v854
      %919 = vst [vmem:[%s172 + $0xb8] sm:$0xff] %v855
      %920 = vst [vmem:[%s172 + $0xc0] sm:$0xff] %v856
      %921 = vst [vmem:[%s172 + $0xc8] sm:$0xff] %v857
      %922 = vst [vmem:[%s172 + $0xd0] sm:$0xff] %v858
      %923 = vst [vmem:[%s172 + $0xd8] sm:$0xff] %v859
      %924 = vst [vmem:[%s172 + $0xe0] sm:$0xff] %v860
      %925 = vst [vmem:[%s172 + $0xe8] sm:$0xff] %v861
      %926 = vst [vmem:[%s172 + $0xf0] sm:$0xff] %v862
      %927 = vst [vmem:[%s172 + $0xf8] sm:$0xff] %v863
      %928 = vst [vmem:[%s172 + $0x100] sm:$0xff] %v864
      %929 = vst [vmem:[%s172 + $0x108] sm:$0xff] %v865
      %930 = vst [vmem:[%s172 + $0x110] sm:$0xff] %v866
      %931 = vst [vmem:[%s172 + $0x118] sm:$0xff] %v867
      %932 = vst [vmem:[%s172 + $0x120] sm:$0xff] %v868
      %933 = vst [vmem:[%s172 + $0x128] sm:$0xff] %v869
      %934 = vst [vmem:[%s172 + $0x130] sm:$0xff] %v870
      %935 = vst [vmem:[%s172 + $0x138] sm:$0xff] %v871
      %936 = vst [vmem:[%s172 + $0x140] sm:$0xff] %v872
      %937 = vst [vmem:[%s172 + $0x148] sm:$0xff] %v873
      %938 = vst [vmem:[%s172 + $0x150] sm:$0xff] %v874
      %939 = vst [vmem:[%s172 + $0x158] sm:$0xff] %v875
      %940 = vst [vmem:[%s172 + $0x160] sm:$0xff] %v876
      %941 = vst [vmem:[%s172 + $0x168] sm:$0xff] %v877
      %942 = vst [vmem:[%s172 + $0x170] sm:$0xff] %v878
      %943 = vst [vmem:[%s172 + $0x178] sm:$0xff] %v879
      %944 = vst [vmem:[%s172 + $0x180] sm:$0xff] %v880
      %945 = vst [vmem:[%s172 + $0x188] sm:$0xff] %v881
      %946 = vst [vmem:[%s172 + $0x190] sm:$0xff] %v882
      %947 = vst [vmem:[%s172 + $0x198] sm:$0xff] %v883
      %948 = vst [vmem:[%s172 + $0x1a0] sm:$0xff] %v884
      %949 = vst [vmem:[%s172 + $0x1a8] sm:$0xff] %v885
      %950 = vst [vmem:[%s172 + $0x1b0] sm:$0xff] %v886
      %951 = vst [vmem:[%s172 + $0x1b8] sm:$0xff] %v887
      %952 = vst [vmem:[%s172 + $0x1c0] sm:$0xff] %v888
      %953 = vst [vmem:[%s172 + $0x1c8] sm:$0xff] %v889
      %954 = vst [vmem:[%s172 + $0x1d0] sm:$0xff] %v890
      %955 = vst [vmem:[%s172 + $0x1d8] sm:$0xff] %v891
      %956 = vst [vmem:[%s172 + $0x1e0] sm:$0xff] %v892
      %957 = vst [vmem:[%s172 + $0x1e8] sm:$0xff] %v893
      %958 = vst [vmem:[%s172 + $0x1f0] sm:$0xff] %v894
      %959 = vst [vmem:[%s172 + $0x1f8] sm:$0xff] %v895
      %s960 = smul.u32 64, %s14
      %p961 = scmp.lt.s32.totalorder %s960, 255
      %s962 = scalar_select %p961, %s960, 255
      %s963 = smul.addr %s962, 8
      %s964 = scalar_lea.vmem %s3, %s963
      // Predicated region
      $region33: #{convnet_forward.5} parent=31 // pred_check
        %p965 = pneg %p100
      $region34: #{convnet_forward.5} parent=31 // pred_check_branch
        %967 = sbr.rel (%p965) target = $region36
      $region35: #{convnet_forward.5} parent=31 // pred_region
        %s968 = smul.u32 64, %s14
      $region36: #{convnet_forward.5} parent=31 // pred_fallthru
        _
    $region32: #{convnet_forward.5} parent=5 // pred_fallthru
      _
    %p969 = scmp.le.s32.totalorder 2, %s9
    // Predicated region
    $region37: #{convnet_forward.5} parent=5 // pred_check
      %p970 = pneg %p969
    $region38: #{convnet_forward.5} parent=5 // pred_check_branch
      %972 = sbr.rel (%p970) target = $region40
    $region39: #{convnet_forward.5} parent=5 // pred_region
      %s973 = ssub.s32 %s9, 2
      // Predicated region
      $region41: #{convnet_forward.5} parent=39 // pred_check
        %p974 = pneg %p106
      $region42: #{convnet_forward.5} parent=39 // pred_check_branch
        %976 = sbr.rel (%p974) target = $region44
      $region43: #{convnet_forward.5} parent=39 // pred_region
        %s977 = smul.u32 64, %s15
        %p978 = scmp.lt.s32.totalorder %s977, 255
        %s979 = scalar_select %p978, %s977, 255
        %s980 = smul.addr %s979, 8
        %s981 = scalar_lea.vmem %s3, %s980
      $region44: #{convnet_forward.5} parent=39 // pred_fallthru
        _
    $region40: #{convnet_forward.5} parent=5 // pred_fallthru
      _
  $region6: #{convnet_forward.5} parent=0 // loop_footer
    %s13 = sadd.s32 1, %s9
  $region7: #{convnet_forward.5} parent=0 // loop_footer_branch
    %8 = sbr.rel target = $region3
  $region8: #{convnet_forward.5} parent=0 // loop_exit
    _

// kernel: convnet_forward.6
$region0: #{convnet_forward.6}
  #allocation0 [shape = 'u32[]', space=smem, size = 0x4, offset = 0x4, fixed_abs, tag = 'smem constant byte address 0x4 - core index']
  #allocation1 [shape = 'u32[144,128]{1,0:T(1,128)}', space=vmem, size = 0x12000, scoped, tag = 'internal scratch']
  %s0 = inlined_call_operand.vmem [shape: f32[4,24,128], index: 0, kind: input, shape index: {}]
  %s1 = inlined_call_operand.vmem [shape: f32[24,128], index: 1, kind: output, shape index: {}]
  %s2 = sld [smem:[#allocation0]]
  $region14: #{convnet_forward.6} parent=0
    _
  %s4 = ssub.s32 1, %s2
  %s5 = scalar_select 0, %s4, %s2
  // Predicated region
  $region2: #{convnet_forward.6} parent=0 // pred_check
    _
  $region3: #{convnet_forward.6} parent=0 // pred_check_branch
    %7 = sbr.rel (0) target = $region5
  $region4: #{convnet_forward.6} parent=0 // pred_region
    _
  $region5: #{convnet_forward.6} parent=0 // pred_fallthru
    _
  %v8 = vld [vmem:[%s0] sm:$0xff]
  %v9 = vld [vmem:[%s0 + $0x8] sm:$0xff]
  %v10 = vld [vmem:[%s0 + $0x10] sm:$0xff]
  %s11 = scalar_lea.vmem %s0, 24
  %v12 = vld [vmem:[%s11] sm:$0xff]
  %v13 = vld [vmem:[%s11 + $0x8] sm:$0xff]
  %v14 = vld [vmem:[%s11 + $0x10] sm:$0xff]
  %v15 = vmax.f32 %v8, %v12
  %v16 = vmax.f32 %v9, %v13
  %v17 = vmax.f32 %v10, %v14
  %s18 = scalar_lea.vmem %s0, 48
  %v19 = vld [vmem:[%s18] sm:$0xff]
  %v20 = vld [vmem:[%s18 + $0x8] sm:$0xff]
  %v21 = vld [vmem:[%s18 + $0x10] sm:$0xff]
  %s22 = scalar_lea.vmem %s0, 72
  %v23 = vld [vmem:[%s22] sm:$0xff]
  %v24 = vld [vmem:[%s22 + $0x8] sm:$0xff]
  %v25 = vld [vmem:[%s22 + $0x10] sm:$0xff]
  %v26 = vmax.f32 %v19, %v23
  %v27 = vmax.f32 %v20, %v24
  %v28 = vmax.f32 %v21, %v25
  %v29 = vmax.f32 %v15, %v26
  %v30 = vmax.f32 %v16, %v27
  %v31 = vmax.f32 %v17, %v28
  %32 = vst [vmem:[%s1] sm:$0xff] %v29
  %33 = vst [vmem:[%s1 + $0x8] sm:$0xff] %v30
  %34 = vst [vmem:[%s1 + $0x10] sm:$0xff] %v31
  // Predicated region
  $region6: #{convnet_forward.6} parent=0 // pred_check
    _
  $region7: #{convnet_forward.6} parent=0 // pred_check_branch
    %36 = sbr.rel (0) target = $region9
  $region8: #{convnet_forward.6} parent=0 // pred_region
    _
  $region9: #{convnet_forward.6} parent=0 // pred_fallthru
    _
  // Predicated region
  $region10: #{convnet_forward.6} parent=0 // pred_check
    _
  $region11: #{convnet_forward.6} parent=0 // pred_check_branch
    %38 = sbr.rel (0) target = $region13
  $region12: #{convnet_forward.6} parent=0 // pred_region
    _
  $region13: #{convnet_forward.6} parent=0 // pred_fallthru
    _

// kernel: convnet_forward.7
$region0: #{convnet_forward.7}
  #allocation0 [shape = 'u32[]', space=smem, size = 0x4, offset = 0x4, fixed_abs, tag = 'smem constant byte address 0x4 - core index']
  #allocation1 [shape = 'u32[144,128]{1,0:T(1,128)}', space=vmem, size = 0x12000, scoped, tag = 'internal scratch']
  %s0 = inlined_call_operand.vmem [shape: bf16[200,152], index: 0, kind: input, shape index: {}]
  %s1 = inlined_call_operand.vmem [shape: bf16[152,128], index: 1, kind: input, shape index: {}]
  %s2 = inlined_call_operand.vmem [shape: f32[1,128], index: 2, kind: input, shape index: {}]
  %s3 = inlined_call_operand.vmem [shape: f32[200,128], index: 3, kind: output, shape index: {}]
  %s4 = sld [smem:[#allocation0]]
  $region22: #{convnet_forward.7} parent=0
    _
  %s6 = ssub.s32 1, %s4
  %s7 = scalar_select 0, %s6, %s4
  // Predicated region
  $region2: #{convnet_forward.7} parent=0 // pred_check
    _
  $region3: #{convnet_forward.7} parent=0 // pred_check_branch
    %9 = sbr.rel (0) target = $region5
  $region4: #{convnet_forward.7} parent=0 // pred_region
    _
  $region5: #{convnet_forward.7} parent=0 // pred_fallthru
    _
  // Predicated region
  $region6: #{convnet_forward.7} parent=0 // pred_check
    _
  $region7: #{convnet_forward.7} parent=0 // pred_check_branch
    %11 = sbr.rel (0) target = $region9
  $region8: #{convnet_forward.7} parent=0 // pred_region
    _
  $region9: #{convnet_forward.7} parent=0 // pred_fallthru
    _
  // Predicated region
  $region10: #{convnet_forward.7} parent=0 // pred_check
    _
  $region11: #{convnet_forward.7} parent=0 // pred_check_branch
    %13 = sbr.rel (0) target = $region13
  $region12: #{convnet_forward.7} parent=0 // pred_region
    _
  $region13: #{convnet_forward.7} parent=0 // pred_fallthru
    _
  %v15 = vld [vmem:[%s0] sm:$0xff]
  %v16 = vld [vmem:[%s0 + $0x8] sm:$0xff]
  %v17 = vld [vmem:[%s0 + $0x10] sm:$0xff]
  %v18 = vld [vmem:[%s0 + $0x18] sm:$0xff]
  %v19 = vld [vmem:[%s0 + $0x20] sm:$0xff]
  %v20 = vld [vmem:[%s0 + $0x28] sm:$0xff]
  %v21 = vld [vmem:[%s0 + $0x30] sm:$0xff]
  %v22 = vld [vmem:[%s0 + $0x38] sm:$0xff]
  %v23 = vld [vmem:[%s0 + $0x40] sm:$0xff]
  %v24 = vld [vmem:[%s0 + $0x48] sm:$0xff]
  %v25 = vld [vmem:[%s0 + $0x50] sm:$0xff]
  %v26 = vld [vmem:[%s0 + $0x58] sm:$0xff]
  %v27 = vld [vmem:[%s0 + $0x60] sm:$0xff]
  %v28 = vld [vmem:[%s0 + $0x68] sm:$0xff]
  %v29 = vld [vmem:[%s0 + $0x70] sm:$0xff]
  %v30 = vld [vmem:[%s0 + $0x78] sm:$0xff]
  %v31 = vld [vmem:[%s0 + $0x80] sm:$0xff]
  %v32 = vld [vmem:[%s0 + $0x88] sm:$0xff]
  %v33 = vld [vmem:[%s0 + $0x90] sm:$0xff]
  %v34 = vld [vmem:[%s0 + $0x98] sm:$0xff]
  %v35 = vld [vmem:[%s0 + $0xa0] sm:$0xff]
  %v36 = vld [vmem:[%s0 + $0xa8] sm:$0xff]
  %v37 = vld [vmem:[%s0 + $0xb0] sm:$0xff]
  %v38 = vld [vmem:[%s0 + $0xb8] sm:$0xff]
  %v39 = vld [vmem:[%s0 + $0xc0] sm:$0xff]
  %v40 = vld [vmem:[%s1] sm:$0xf]
  %v41 = vld [vmem:[%s1 + $0x4] sm:$0xf]
  %v42 = vld [vmem:[%s1 + $0x8] sm:$0xf]
  %v43 = vld [vmem:[%s1 + $0xc] sm:$0xf]
  %v44 = vld [vmem:[%s1 + $0x10] sm:$0xf]
  %v45 = vld [vmem:[%s1 + $0x14] sm:$0xf]
  %v46 = vld [vmem:[%s1 + $0x18] sm:$0xf]
  %v47 = vld [vmem:[%s1 + $0x1c] sm:$0xf]
  %v48 = vld [vmem:[%s1 + $0x20] sm:$0xf]
  %v49 = vld [vmem:[%s1 + $0x24] sm:$0xf]
  %v50 = vld [vmem:[%s1 + $0x28] sm:$0xf]
  %v51 = vld [vmem:[%s1 + $0x2c] sm:$0xf]
  %v52 = vld [vmem:[%s1 + $0x30] sm:$0xf]
  %v53 = vld [vmem:[%s1 + $0x34] sm:$0xf]
  %v54 = vld [vmem:[%s1 + $0x38] sm:$0xf]
  %v55 = vld [vmem:[%s1 + $0x3c] sm:$0xf]
  %v56 = vld [vmem:[%s1 + $0x40] sm:$0xf]
  %v57 = vld [vmem:[%s1 + $0x44] sm:$0xf]
  %v58 = vld [vmem:[%s1 + $0x48] sm:$0xf]
  %v59 = vld [vmem:[%s2] sm:$0x1]
  %v61 = vlaneseq
  %v62 = vshrl.u32 %v61, 7
  %v63 = vsub.s32 0, %v62
  %v64 = vrot.slane %v59, %v63
  %v91 = vunpack.c.l.b16 %v15
  %v92 = vunpack.c.h.b16 %v15
  %v93 = vunpack.c.l.b16 %v16
  %v94 = vunpack.c.h.b16 %v16
  %v95 = vunpack.c.l.b16 %v17
  %v96 = vunpack.c.h.b16 %v17
  %v97 = vunpack.c.l.b16 %v18
  %v98 = vunpack.c.h.b16 %v18
  %v99 = vunpack.c.l.b16 %v19
  %v100 = vunpack.c.h.b16 %v19
  %v101 = vunpack.c.l.b16 %v20
  %v102 = vunpack.c.h.b16 %v20
  %v103 = vunpack.c.l.b16 %v21
  %v104 = vunpack.c.h.b16 %v21
  %v105 = vunpack.c.l.b16 %v22
  %v106 = vunpack.c.h.b16 %v22
  %v107 = vunpack.c.l.b16 %v23
  %v108 = vunpack.c.h.b16 %v23
  %v109 = vunpack.c.l.b16 %v24
  %v110 = vunpack.c.h.b16 %v24
  %v111 = vunpack.c.l.b16 %v25
  %v112 = vunpack.c.h.b16 %v25
  %v113 = vunpack.c.l.b16 %v26
  %v114 = vunpack.c.h.b16 %v26
  %v115 = vunpack.c.l.b16 %v27
  %v116 = vunpack.c.h.b16 %v27
  %v117 = vunpack.c.l.b16 %v28
  %v118 = vunpack.c.h.b16 %v28
  %v119 = vunpack.c.l.b16 %v29
  %v120 = vunpack.c.h.b16 %v29
  %v121 = vunpack.c.l.b16 %v30
  %v122 = vunpack.c.h.b16 %v30
  %v123 = vunpack.c.l.b16 %v31
  %v124 = vunpack.c.h.b16 %v31
  %v125 = vunpack.c.l.b16 %v32
  %v126 = vunpack.c.h.b16 %v32
  %v127 = vunpack.c.l.b16 %v33
  %v128 = vunpack.c.h.b16 %v33
  %v129 = vunpack.c.l.b16 %v34
  %v130 = vunpack.c.h.b16 %v34
  %v131 = vunpack.c.l.b16 %v35
  %v132 = vunpack.c.h.b16 %v35
  %v133 = vunpack.c.l.b16 %v36
  %v134 = vunpack.c.h.b16 %v36
  %v135 = vunpack.c.l.b16 %v37
  %v136 = vunpack.c.h.b16 %v37
  %v137 = vunpack.c.l.b16 %v38
  %v138 = vunpack.c.h.b16 %v38
  %v139 = vunpack.c.l.b16 %v39
  %v140 = vunpack.c.h.b16 %v39
  %v141 = vpack.c.b16 %v93, %v91
  %v142 = vpack.c.b16 %v94, %v92
  %v143 = vpack.c.b16 %v97, %v95
  %v144 = vpack.c.b16 %v98, %v96
  %v145 = vpack.c.b16 %v101, %v99
  %v146 = vpack.c.b16 %v102, %v100
  %v147 = vpack.c.b16 %v105, %v103
  %v148 = vpack.c.b16 %v106, %v104
  %v149 = vpack.c.b16 %v109, %v107
  %v150 = vpack.c.b16 %v110, %v108
  %v151 = vpack.c.b16 %v113, %v111
  %v152 = vpack.c.b16 %v114, %v112
  %v153 = vpack.c.b16 %v117, %v115
  %v154 = vpack.c.b16 %v118, %v116
  %v155 = vpack.c.b16 %v121, %v119
  %v156 = vpack.c.b16 %v122, %v120
  %v157 = vpack.c.b16 %v125, %v123
  %v158 = vpack.c.b16 %v126, %v124
  %v159 = vpack.c.b16 %v129, %v127
  %v160 = vpack.c.b16 %v130, %v128
  %v161 = vpack.c.b16 %v133, %v131
  %v162 = vpack.c.b16 %v134, %v132
  %v163 = vpack.c.b16 %v137, %v135
  %v164 = vpack.c.b16 %v138, %v136
  %v165 = vpack.c.b16 %v139, %v139
  %v166 = vpack.c.b16 %v140, %v140
  %v199 = vunpack.c.l.b16 %v40
  %v200 = vunpack.c.l.b16 %v41
  %v201 = vunpack.c.l.b16 %v42
  %v202 = vunpack.c.l.b16 %v43
  %v203 = vunpack.c.l.b16 %v44
  %v204 = vunpack.c.l.b16 %v45
  %v205 = vunpack.c.l.b16 %v46
  %v206 = vunpack.c.l.b16 %v47
  %v207 = vunpack.c.l.b16 %v48
  %v208 = vunpack.c.l.b16 %v49
  %v209 = vunpack.c.l.b16 %v50
  %v210 = vunpack.c.l.b16 %v51
  %v211 = vunpack.c.l.b16 %v52
  %v212 = vunpack.c.l.b16 %v53
  %v213 = vunpack.c.l.b16 %v54
  %v214 = vunpack.c.l.b16 %v55
  %v215 = vunpack.c.l.b16 %v56
  %v216 = vunpack.c.l.b16 %v57
  %v217 = vunpack.c.l.b16 %v58
  %v218 = vpack.c.b16 %v200, %v199
  %v219 = vpack.c.b16 %v202, %v201
  %v220 = vpack.c.b16 %v204, %v203
  %v221 = vpack.c.b16 %v206, %v205
  %v222 = vpack.c.b16 %v208, %v207
  %v223 = vpack.c.b16 %v210, %v209
  %v224 = vpack.c.b16 %v212, %v211
  %v225 = vpack.c.b16 %v214, %v213
  %v226 = vpack.c.b16 %v216, %v215
  %v227 = vpack.c.b16 %v217, %v217
  %vm237 = vcmask 195584
  %v239 = vsel %vm237, %v142, 0
  %v242 = vsel %vm237, %v144, 0
  %v245 = vsel %vm237, %v146, 0
  %v248 = vsel %vm237, %v148, 0
  %v251 = vsel %vm237, %v150, 0
  %v254 = vsel %vm237, %v152, 0
  %v257 = vsel %vm237, %v154, 0
  %v260 = vsel %vm237, %v156, 0
  %v263 = vsel %vm237, %v158, 0
  %v266 = vsel %vm237, %v160, 0
  %v269 = vsel %vm237, %v162, 0
  %v272 = vsel %vm237, %v164, 0
  %v275 = vsel %vm237, %v166, 0
  %vm277 = vcmask 1043456
  %v279 = vsel %vm277, %v227, 0
  %281 = vmatprep.subr.bf16.mxu0 0
  %282 = vmatpush1.bf16.msra.mxu0 %v218
  %283 = vmatprep.subr.bf16.mxu0 0
  %284 = vmatpush1.bf16.msra.mxu0 %v219
  %285 = vmatprep.subr.bf16.mxu0 0
  %286 = vmatpush1.bf16.msra.mxu0 %v220
  %287 = vmatprep.subr.bf16.mxu0 0
  %288 = vmatpush1.bf16.msra.mxu0 %v221
  %289 = vmatprep.subr.bf16.mxu0 0
  %290 = vmatpush1.bf16.msra.mxu0 %v222
  %291 = vmatprep.subr.bf16.mxu0 0
  %292 = vmatpush1.bf16.msra.mxu0 %v223
  %293 = vmatprep.subr.bf16.mxu0 0
  %294 = vmatpush1.bf16.msra.mxu0 %v224
  %295 = vmatprep.subr.bf16.mxu0 0
  %296 = vmatpush1.bf16.msra.mxu0 %v225
  %297 = vmatprep.subr.bf16.mxu0 0
  %298 = vmatpush1.bf16.msra.mxu0 %v226
  %299 = vmatprep.subr.bf16.mxu0 0
  %300 = vmatpush1.bf16.msra.mxu0 %v279
  %301 = vmatprep.subr.bf16.mxu0 0
  %302 = vmatpush1.bf16.msra.mxu0 0
  %303 = vmatprep.subr.bf16.mxu0 0
  %304 = vmatpush1.bf16.msra.mxu0 0
  %305 = vmatprep.subr.bf16.mxu0 0
  %306 = vmatpush1.bf16.msra.mxu0 0
  %307 = vmatprep.subr.bf16.mxu0 0
  %308 = vmatpush1.bf16.msra.mxu0 0
  %309 = vmatprep.subr.bf16.mxu0 0
  %310 = vmatpush1.bf16.msra.mxu0 0
  %311 = vmatprep.subr.bf16.mxu0 0
  %312 = vmatpush1.bf16.msra.mxu0 0
  %313 = vmatprep.mubr.bf16.mxu0 %v239
  %314 = vmatmul.mubr.bf16.gmra.mrb[0].mxu0 %v141
  %v315 = vpop.f32.mrb[0].mxu0
  %v316 = vadd.f32 %v64, %v315
  %v317 = vpop.f32.mrb[0].mxu0
  %v318 = vpop.f32.mrb[0].mxu0
  %v319 = vadd.f32 %v64, %v318
  %v320 = vpop.f32.mrb[0].mxu0
  %321 = vmatprep.mubr.bf16.mxu0 %v242
  %322 = vmatmul.mubr.bf16.gmra.mrb[0].mxu0 %v143
  %v323 = vpop.f32.mrb[0].mxu0
  %v324 = vadd.f32 %v64, %v323
  %v325 = vpop.f32.mrb[0].mxu0
  %v326 = vpop.f32.mrb[0].mxu0
  %v327 = vadd.f32 %v64, %v326
  %v328 = vpop.f32.mrb[0].mxu0
  %329 = vmatprep.mubr.bf16.mxu0 %v245
  %330 = vmatmul.mubr.bf16.gmra.mrb[0].mxu0 %v145
  %v331 = vpop.f32.mrb[0].mxu0
  %v332 = vadd.f32 %v64, %v331
  %v333 = vpop.f32.mrb[0].mxu0
  %v334 = vpop.f32.mrb[0].mxu0
  %v335 = vadd.f32 %v64, %v334
  %v336 = vpop.f32.mrb[0].mxu0
  %337 = vmatprep.mubr.bf16.mxu0 %v248
  %338 = vmatmul.mubr.bf16.gmra.mrb[0].mxu0 %v147
  %v339 = vpop.f32.mrb[0].mxu0
  %v340 = vadd.f32 %v64, %v339
  %v341 = vpop.f32.mrb[0].mxu0
  %v342 = vpop.f32.mrb[0].mxu0
  %v343 = vadd.f32 %v64, %v342
  %v344 = vpop.f32.mrb[0].mxu0
  %345 = vmatprep.mubr.bf16.mxu0 %v251
  %346 = vmatmul.mubr.bf16.gmra.mrb[0].mxu0 %v149
  %v347 = vpop.f32.mrb[0].mxu0
  %v348 = vadd.f32 %v64, %v347
  %v349 = vpop.f32.mrb[0].mxu0
  %v350 = vpop.f32.mrb[0].mxu0
  %v351 = vadd.f32 %v64, %v350
  %v352 = vpop.f32.mrb[0].mxu0
  %353 = vmatprep.mubr.bf16.mxu0 %v254
  %354 = vmatmul.mubr.bf16.gmra.mrb[0].mxu0 %v151
  %v355 = vpop.f32.mrb[0].mxu0
  %v356 = vadd.f32 %v64, %v355
  %v357 = vpop.f32.mrb[0].mxu0
  %v358 = vpop.f32.mrb[0].mxu0
  %v359 = vadd.f32 %v64, %v358
  %v360 = vpop.f32.mrb[0].mxu0
  %361 = vmatprep.mubr.bf16.mxu0 %v257
  %362 = vmatmul.mubr.bf16.gmra.mrb[0].mxu0 %v153
  %v363 = vpop.f32.mrb[0].mxu0
  %v364 = vadd.f32 %v64, %v363
  %v365 = vpop.f32.mrb[0].mxu0
  %v366 = vpop.f32.mrb[0].mxu0
  %v367 = vadd.f32 %v64, %v366
  %v368 = vpop.f32.mrb[0].mxu0
  %369 = vmatprep.mubr.bf16.mxu0 %v260
  %370 = vmatmul.mubr.bf16.gmra.mrb[0].mxu0 %v155
  %v371 = vpop.f32.mrb[0].mxu0
  %v372 = vadd.f32 %v64, %v371
  %v373 = vpop.f32.mrb[0].mxu0
  %v374 = vpop.f32.mrb[0].mxu0
  %v375 = vadd.f32 %v64, %v374
  %v376 = vpop.f32.mrb[0].mxu0
  %377 = vmatprep.mubr.bf16.mxu0 %v263
  %378 = vmatmul.mubr.bf16.gmra.mrb[0].mxu0 %v157
  %v379 = vpop.f32.mrb[0].mxu0
  %v380 = vadd.f32 %v64, %v379
  %v381 = vpop.f32.mrb[0].mxu0
  %v382 = vpop.f32.mrb[0].mxu0
  %v383 = vadd.f32 %v64, %v382
  %v384 = vpop.f32.mrb[0].mxu0
  %385 = vmatprep.mubr.bf16.mxu0 %v266
  %386 = vmatmul.mubr.bf16.gmra.mrb[0].mxu0 %v159
  %v387 = vpop.f32.mrb[0].mxu0
  %v388 = vadd.f32 %v64, %v387
  %v389 = vpop.f32.mrb[0].mxu0
  %v390 = vpop.f32.mrb[0].mxu0
  %v391 = vadd.f32 %v64, %v390
  %v392 = vpop.f32.mrb[0].mxu0
  %393 = vmatprep.mubr.bf16.mxu0 %v269
  %394 = vmatmul.mubr.bf16.gmra.mrb[0].mxu0 %v161
  %v395 = vpop.f32.mrb[0].mxu0
  %v396 = vadd.f32 %v64, %v395
  %v397 = vpop.f32.mrb[0].mxu0
  %v398 = vpop.f32.mrb[0].mxu0
  %v399 = vadd.f32 %v64, %v398
  %v400 = vpop.f32.mrb[0].mxu0
  %401 = vmatprep.mubr.bf16.mxu0 %v272
  %402 = vmatmul.mubr.bf16.gmra.mrb[0].mxu0 %v163
  %v403 = vpop.f32.mrb[0].mxu0
  %v404 = vadd.f32 %v64, %v403
  %v405 = vpop.f32.mrb[0].mxu0
  %v406 = vpop.f32.mrb[0].mxu0
  %v407 = vadd.f32 %v64, %v406
  %v408 = vpop.f32.mrb[0].mxu0
  %409 = vmatprep.mubr.bf16.mxu0 %v275
  %410 = vmatmul.mubr.bf16.gmra.mrb[0].mxu0 %v165
  %v411 = vpop.f32.mrb[0].mxu0
  %v412 = vadd.f32 %v64, %v411
  %v413 = vpop.f32.mrb[0].mxu0
  %v414 = vpop.f32.mrb[0].mxu0
  %v415 = vpop.f32.mrb[0].mxu0
  %416 = vdwg.mxu0
  %v417 = vmax.f32 %v316, 0.0
  %v418 = vmax.f32 %v319, 0.0
  %v419 = vmax.f32 %v324, 0.0
  %v420 = vmax.f32 %v327, 0.0
  %v421 = vmax.f32 %v332, 0.0
  %v422 = vmax.f32 %v335, 0.0
  %v423 = vmax.f32 %v340, 0.0
  %v424 = vmax.f32 %v343, 0.0
  %v425 = vmax.f32 %v348, 0.0
  %v426 = vmax.f32 %v351, 0.0
  %v427 = vmax.f32 %v356, 0.0
  %v428 = vmax.f32 %v359, 0.0
  %v429 = vmax.f32 %v364, 0.0
  %v430 = vmax.f32 %v367, 0.0
  %v431 = vmax.f32 %v372, 0.0
  %v432 = vmax.f32 %v375, 0.0
  %v433 = vmax.f32 %v380, 0.0
  %v434 = vmax.f32 %v383, 0.0
  %v435 = vmax.f32 %v388, 0.0
  %v436 = vmax.f32 %v391, 0.0
  %v437 = vmax.f32 %v396, 0.0
  %v438 = vmax.f32 %v399, 0.0
  %v439 = vmax.f32 %v404, 0.0
  %v440 = vmax.f32 %v407, 0.0
  %v441 = vmax.f32 %v412, 0.0
  %442 = vst [vmem:[%s3] sm:$0xff] %v417
  %443 = vst [vmem:[%s3 + $0x8] sm:$0xff] %v418
  %444 = vst [vmem:[%s3 + $0x10] sm:$0xff] %v419
  %445 = vst [vmem:[%s3 + $0x18] sm:$0xff] %v420
  %446 = vst [vmem:[%s3 + $0x20] sm:$0xff] %v421
  %447 = vst [vmem:[%s3 + $0x28] sm:$0xff] %v422
  %448 = vst [vmem:[%s3 + $0x30] sm:$0xff] %v423
  %449 = vst [vmem:[%s3 + $0x38] sm:$0xff] %v424
  %450 = vst [vmem:[%s3 + $0x40] sm:$0xff] %v425
  %451 = vst [vmem:[%s3 + $0x48] sm:$0xff] %v426
  %452 = vst [vmem:[%s3 + $0x50] sm:$0xff] %v427
  %453 = vst [vmem:[%s3 + $0x58] sm:$0xff] %v428
  %454 = vst [vmem:[%s3 + $0x60] sm:$0xff] %v429
  %455 = vst [vmem:[%s3 + $0x68] sm:$0xff] %v430
  %456 = vst [vmem:[%s3 + $0x70] sm:$0xff] %v431
  %457 = vst [vmem:[%s3 + $0x78] sm:$0xff] %v432
  %458 = vst [vmem:[%s3 + $0x80] sm:$0xff] %v433
  %459 = vst [vmem:[%s3 + $0x88] sm:$0xff] %v434
  %460 = vst [vmem:[%s3 + $0x90] sm:$0xff] %v435
  %461 = vst [vmem:[%s3 + $0x98] sm:$0xff] %v436
  %462 = vst [vmem:[%s3 + $0xa0] sm:$0xff] %v437
  %463 = vst [vmem:[%s3 + $0xa8] sm:$0xff] %v438
  %464 = vst [vmem:[%s3 + $0xb0] sm:$0xff] %v439
  %465 = vst [vmem:[%s3 + $0xb8] sm:$0xff] %v440
  %466 = vst [vmem:[%s3 + $0xc0] sm:$0xff] %v441
  // Predicated region
  $region14: #{convnet_forward.7} parent=0 // pred_check
    _
  $region15: #{convnet_forward.7} parent=0 // pred_check_branch
    %468 = sbr.rel (0) target = $region17
  $region16: #{convnet_forward.7} parent=0 // pred_region
    _
  $region17: #{convnet_forward.7} parent=0 // pred_fallthru
    _
  // Predicated region
  $region18: #{convnet_forward.7} parent=0 // pred_check
    _
  $region19: #{convnet_forward.7} parent=0 // pred_check_branch
    %470 = sbr.rel (0) target = $region21
  $region20: #{convnet_forward.7} parent=0 // pred_region
    _
  $region21: #{convnet_forward.7} parent=0 // pred_fallthru
    _

// kernel: convnet_forward.8
$region0: #{convnet_forward.8}
  #allocation0 [shape = 'u32[]', space=smem, size = 0x4, offset = 0x4, fixed_abs, tag = 'smem constant byte address 0x4 - core index']
  #allocation1 [shape = 'u32[144,128]{1,0:T(1,128)}', space=vmem, size = 0x12000, scoped, tag = 'internal scratch']
  %s0 = inlined_call_operand.vmem [shape: f32[4,8,128], index: 0, kind: input, shape index: {}]
  %s1 = inlined_call_operand.vmem [shape: f32[8,128], index: 1, kind: output, shape index: {}]
  %s2 = sld [smem:[#allocation0]]
  $region14: #{convnet_forward.8} parent=0
    _
  %s4 = ssub.s32 1, %s2
  %s5 = scalar_select 0, %s4, %s2
  // Predicated region
  $region2: #{convnet_forward.8} parent=0 // pred_check
    _
  $region3: #{convnet_forward.8} parent=0 // pred_check_branch
    %7 = sbr.rel (0) target = $region5
  $region4: #{convnet_forward.8} parent=0 // pred_region
    _
  $region5: #{convnet_forward.8} parent=0 // pred_fallthru
    _
  %v8 = vld [vmem:[%s0] sm:$0xff]
  %s9 = scalar_lea.vmem %s0, 8
  %v10 = vld [vmem:[%s9] sm:$0xff]
  %v11 = vmax.f32 %v8, %v10
  %s12 = scalar_lea.vmem %s0, 16
  %v13 = vld [vmem:[%s12] sm:$0xff]
  %s14 = scalar_lea.vmem %s0, 24
  %v15 = vld [vmem:[%s14] sm:$0xff]
  %v16 = vmax.f32 %v13, %v15
  %v17 = vmax.f32 %v11, %v16
  %18 = vst [vmem:[%s1] sm:$0xff] %v17
  // Predicated region
  $region6: #{convnet_forward.8} parent=0 // pred_check
    _
  $region7: #{convnet_forward.8} parent=0 // pred_check_branch
    %20 = sbr.rel (0) target = $region9
  $region8: #{convnet_forward.8} parent=0 // pred_region
    _
  $region9: #{convnet_forward.8} parent=0 // pred_fallthru
    _
  // Predicated region
  $region10: #{convnet_forward.8} parent=0 // pred_check
    _
  $region11: #{convnet_forward.8} parent=0 // pred_check_branch
    %22 = sbr.rel (0) target = $region13
  $region12: #{convnet_forward.8} parent=0 // pred_region
    _
  $region13: #{convnet_forward.8} parent=0 // pred_fallthru
    _

// kernel: convnet_forward.9
$region0: #{convnet_forward.9}
  #allocation0 [shape = 'u32[]', space=smem, size = 0x4, offset = 0x4, fixed_abs, tag = 'smem constant byte address 0x4 - core index']
  #allocation1 [shape = 'u32[144,128]{1,0:T(1,128)}', space=vmem, size = 0x12000, scoped, tag = 'internal scratch']
  %s0 = inlined_call_operand.vmem [shape: bf16[8,400], index: 0, kind: input, shape index: {}]
  %s1 = inlined_call_operand.vmem [shape: bf16[400,128], index: 1, kind: input, shape index: {}]
  %s2 = inlined_call_operand.vmem [shape: f32[1,128], index: 2, kind: input, shape index: {}]
  %s3 = inlined_call_operand.vmem [shape: bf16[128,128], index: 3, kind: input, shape index: {}]
  %s4 = inlined_call_operand.vmem [shape: f32[1,128], index: 4, kind: input, shape index: {}]
  %s5 = inlined_call_operand.vmem [shape: bf16[128,128], index: 5, kind: input, shape index: {}]
  %s6 = inlined_call_operand.vmem [shape: f32[1,128], index: 6, kind: input, shape index: {}]
  %s7 = inlined_call_operand.vmem [shape: f32[8,128], index: 7, kind: output, shape index: {}]
  %s8 = sld [smem:[#allocation0]]
  $region38: #{convnet_forward.9} parent=0
    _
  %s10 = ssub.s32 1, %s8
  %s11 = scalar_select 0, %s10, %s8
  // Predicated region
  $region2: #{convnet_forward.9} parent=0 // pred_check
    _
  $region3: #{convnet_forward.9} parent=0 // pred_check_branch
    %13 = sbr.rel (0) target = $region5
  $region4: #{convnet_forward.9} parent=0 // pred_region
    _
  $region5: #{convnet_forward.9} parent=0 // pred_fallthru
    _
  // Predicated region
  $region6: #{convnet_forward.9} parent=0 // pred_check
    _
  $region7: #{convnet_forward.9} parent=0 // pred_check_branch
    %15 = sbr.rel (0) target = $region9
  $region8: #{convnet_forward.9} parent=0 // pred_region
    _
  $region9: #{convnet_forward.9} parent=0 // pred_fallthru
    _
  // Predicated region
  $region10: #{convnet_forward.9} parent=0 // pred_check
    _
  $region11: #{convnet_forward.9} parent=0 // pred_check_branch
    %17 = sbr.rel (0) target = $region13
  $region12: #{convnet_forward.9} parent=0 // pred_region
    _
  $region13: #{convnet_forward.9} parent=0 // pred_fallthru
    _
  // Predicated region
  $region14: #{convnet_forward.9} parent=0 // pred_check
    _
  $region15: #{convnet_forward.9} parent=0 // pred_check_branch
    %19 = sbr.rel (0) target = $region17
  $region16: #{convnet_forward.9} parent=0 // pred_region
    _
  $region17: #{convnet_forward.9} parent=0 // pred_fallthru
    _
  // Predicated region
  $region18: #{convnet_forward.9} parent=0 // pred_check
    _
  $region19: #{convnet_forward.9} parent=0 // pred_check_branch
    %21 = sbr.rel (0) target = $region21
  $region20: #{convnet_forward.9} parent=0 // pred_region
    _
  $region21: #{convnet_forward.9} parent=0 // pred_fallthru
    _
  // Predicated region
  $region22: #{convnet_forward.9} parent=0 // pred_check
    _
  $region23: #{convnet_forward.9} parent=0 // pred_check_branch
    %23 = sbr.rel (0) target = $region25
  $region24: #{convnet_forward.9} parent=0 // pred_region
    _
  $region25: #{convnet_forward.9} parent=0 // pred_fallthru
    _
  // Predicated region
  $region26: #{convnet_forward.9} parent=0 // pred_check
    _
  $region27: #{convnet_forward.9} parent=0 // pred_check_branch
    %25 = sbr.rel (0) target = $region29
  $region28: #{convnet_forward.9} parent=0 // pred_region
    _
  $region29: #{convnet_forward.9} parent=0 // pred_fallthru
    _
  %v27 = vld [vmem:[%s0] sm:$0xff]
  %v28 = vld [vmem:[%s0 + $0x8] sm:$0xff]
  %v29 = vld [vmem:[%s1] sm:$0xf]
  %v30 = vld [vmem:[%s1 + $0x4] sm:$0xf]
  %v31 = vld [vmem:[%s1 + $0x8] sm:$0xf]
  %v32 = vld [vmem:[%s1 + $0xc] sm:$0xf]
  %v33 = vld [vmem:[%s1 + $0x10] sm:$0xf]
  %v34 = vld [vmem:[%s1 + $0x14] sm:$0xf]
  %v35 = vld [vmem:[%s1 + $0x18] sm:$0xf]
  %v36 = vld [vmem:[%s1 + $0x1c] sm:$0xf]
  %v37 = vld [vmem:[%s1 + $0x20] sm:$0xf]
  %v38 = vld [vmem:[%s1 + $0x24] sm:$0xf]
  %v39 = vld [vmem:[%s1 + $0x28] sm:$0xf]
  %v40 = vld [vmem:[%s1 + $0x2c] sm:$0xf]
  %v41 = vld [vmem:[%s1 + $0x30] sm:$0xf]
  %v42 = vld [vmem:[%s1 + $0x34] sm:$0xf]
  %v43 = vld [vmem:[%s1 + $0x38] sm:$0xf]
  %v44 = vld [vmem:[%s1 + $0x3c] sm:$0xf]
  %v45 = vld [vmem:[%s1 + $0x40] sm:$0xf]
  %v46 = vld [vmem:[%s1 + $0x44] sm:$0xf]
  %v47 = vld [vmem:[%s1 + $0x48] sm:$0xf]
  %v48 = vld [vmem:[%s1 + $0x4c] sm:$0xf]
  %v49 = vld [vmem:[%s1 + $0x50] sm:$0xf]
  %v50 = vld [vmem:[%s1 + $0x54] sm:$0xf]
  %v51 = vld [vmem:[%s1 + $0x58] sm:$0xf]
  %v52 = vld [vmem:[%s1 + $0x5c] sm:$0xf]
  %v53 = vld [vmem:[%s1 + $0x60] sm:$0xf]
  %v54 = vld [vmem:[%s1 + $0x64] sm:$0xf]
  %v55 = vld [vmem:[%s1 + $0x68] sm:$0xf]
  %v56 = vld [vmem:[%s1 + $0x6c] sm:$0xf]
  %v57 = vld [vmem:[%s1 + $0x70] sm:$0xf]
  %v58 = vld [vmem:[%s1 + $0x74] sm:$0xf]
  %v59 = vld [vmem:[%s1 + $0x78] sm:$0xf]
  %v60 = vld [vmem:[%s1 + $0x7c] sm:$0xf]
  %v61 = vld [vmem:[%s1 + $0x80] sm:$0xf]
  %v62 = vld [vmem:[%s1 + $0x84] sm:$0xf]
  %v63 = vld [vmem:[%s1 + $0x88] sm:$0xf]
  %v64 = vld [vmem:[%s1 + $0x8c] sm:$0xf]
  %v65 = vld [vmem:[%s1 + $0x90] sm:$0xf]
  %v66 = vld [vmem:[%s1 + $0x94] sm:$0xf]
  %v67 = vld [vmem:[%s1 + $0x98] sm:$0xf]
  %v68 = vld [vmem:[%s1 + $0x9c] sm:$0xf]
  %v69 = vld [vmem:[%s1 + $0xa0] sm:$0xf]
  %v70 = vld [vmem:[%s1 + $0xa4] sm:$0xf]
  %v71 = vld [vmem:[%s1 + $0xa8] sm:$0xf]
  %v72 = vld [vmem:[%s1 + $0xac] sm:$0xf]
  %v73 = vld [vmem:[%s1 + $0xb0] sm:$0xf]
  %v74 = vld [vmem:[%s1 + $0xb4] sm:$0xf]
  %v75 = vld [vmem:[%s1 + $0xb8] sm:$0xf]
  %v76 = vld [vmem:[%s1 + $0xbc] sm:$0xf]
  %v77 = vld [vmem:[%s1 + $0xc0] sm:$0xf]
  %v78 = vld [vmem:[%s1 + $0xc4] sm:$0xf]
  %v79 = vld [vmem:[%s2] sm:$0x1]
  %v81 = vlaneseq
  %v82 = vshrl.u32 %v81, 7
  %v83 = vsub.s32 0, %v82
  %v84 = vrot.slane %v79, %v83
  %v88 = vunpack.c.l.b16 %v27
  %v89 = vunpack.c.h.b16 %v27
  %v90 = vunpack.c.l.b16 %v28
  %v91 = vunpack.c.h.b16 %v28
  %v92 = vpack.c.b16 %v88, %v88
  %v93 = vpack.c.b16 %v89, %v89
  %v94 = vpack.c.b16 %v90, %v90
  %v95 = vpack.c.b16 %v91, %v91
  %v149 = vunpack.c.l.b16 %v29
  %v150 = vunpack.c.l.b16 %v30
  %v151 = vunpack.c.l.b16 %v31
  %v152 = vunpack.c.l.b16 %v32
  %v153 = vunpack.c.l.b16 %v33
  %v154 = vunpack.c.l.b16 %v34
  %v155 = vunpack.c.l.b16 %v35
  %v156 = vunpack.c.l.b16 %v36
  %v157 = vunpack.c.l.b16 %v37
  %v158 = vunpack.c.l.b16 %v38
  %v159 = vunpack.c.l.b16 %v39
  %v160 = vunpack.c.l.b16 %v40
  %v161 = vunpack.c.l.b16 %v41
  %v162 = vunpack.c.l.b16 %v42
  %v163 = vunpack.c.l.b16 %v43
  %v164 = vunpack.c.l.b16 %v44
  %v165 = vunpack.c.l.b16 %v45
  %v166 = vunpack.c.l.b16 %v46
  %v167 = vunpack.c.l.b16 %v47
  %v168 = vunpack.c.l.b16 %v48
  %v169 = vunpack.c.l.b16 %v49
  %v170 = vunpack.c.l.b16 %v50
  %v171 = vunpack.c.l.b16 %v51
  %v172 = vunpack.c.l.b16 %v52
  %v173 = vunpack.c.l.b16 %v53
  %v174 = vunpack.c.l.b16 %v54
  %v175 = vunpack.c.l.b16 %v55
  %v176 = vunpack.c.l.b16 %v56
  %v177 = vunpack.c.l.b16 %v57
  %v178 = vunpack.c.l.b16 %v58
  %v179 = vunpack.c.l.b16 %v59
  %v180 = vunpack.c.l.b16 %v60
  %v181 = vunpack.c.l.b16 %v61
  %v182 = vunpack.c.l.b16 %v62
  %v183 = vunpack.c.l.b16 %v63
  %v184 = vunpack.c.l.b16 %v64
  %v185 = vunpack.c.l.b16 %v65
  %v186 = vunpack.c.l.b16 %v66
  %v187 = vunpack.c.l.b16 %v67
  %v188 = vunpack.c.l.b16 %v68
  %v189 = vunpack.c.l.b16 %v69
  %v190 = vunpack.c.l.b16 %v70
  %v191 = vunpack.c.l.b16 %v71
  %v192 = vunpack.c.l.b16 %v72
  %v193 = vunpack.c.l.b16 %v73
  %v194 = vunpack.c.l.b16 %v74
  %v195 = vunpack.c.l.b16 %v75
  %v196 = vunpack.c.l.b16 %v76
  %v197 = vunpack.c.l.b16 %v77
  %v198 = vunpack.c.l.b16 %v78
  %v199 = vpack.c.b16 %v150, %v149
  %v200 = vpack.c.b16 %v152, %v151
  %v201 = vpack.c.b16 %v154, %v153
  %v202 = vpack.c.b16 %v156, %v155
  %v203 = vpack.c.b16 %v158, %v157
  %v204 = vpack.c.b16 %v160, %v159
  %v205 = vpack.c.b16 %v162, %v161
  %v206 = vpack.c.b16 %v164, %v163
  %v207 = vpack.c.b16 %v166, %v165
  %v208 = vpack.c.b16 %v168, %v167
  %v209 = vpack.c.b16 %v170, %v169
  %v210 = vpack.c.b16 %v172, %v171
  %v211 = vpack.c.b16 %v174, %v173
  %v212 = vpack.c.b16 %v176, %v175
  %v213 = vpack.c.b16 %v178, %v177
  %v214 = vpack.c.b16 %v180, %v179
  %v215 = vpack.c.b16 %v182, %v181
  %v216 = vpack.c.b16 %v184, %v183
  %v217 = vpack.c.b16 %v186, %v185
  %v218 = vpack.c.b16 %v188, %v187
  %v219 = vpack.c.b16 %v190, %v189
  %v220 = vpack.c.b16 %v192, %v191
  %v221 = vpack.c.b16 %v194, %v193
  %v222 = vpack.c.b16 %v196, %v195
  %v223 = vpack.c.b16 %v198, %v197
  %vm249 = vcmask 130048
  %v251 = vsel %vm249, %v95, 0
  %253 = vmatprep.subr.bf16.mxu0 0
  %254 = vmatpush1.bf16.msra.mxu0 %v199
  %255 = vmatprep.subr.bf16.mxu0 0
  %256 = vmatpush1.bf16.msra.mxu0 %v200
  %257 = vmatprep.subr.bf16.mxu0 0
  %258 = vmatpush1.bf16.msra.mxu0 %v201
  %259 = vmatprep.subr.bf16.mxu0 0
  %260 = vmatpush1.bf16.msra.mxu0 %v202
  %261 = vmatprep.subr.bf16.mxu0 0
  %262 = vmatpush1.bf16.msra.mxu0 %v203
  %263 = vmatprep.subr.bf16.mxu0 0
  %264 = vmatpush1.bf16.msra.mxu0 %v204
  %265 = vmatprep.subr.bf16.mxu0 0
  %266 = vmatpush1.bf16.msra.mxu0 %v205
  %267 = vmatprep.subr.bf16.mxu0 0
  %268 = vmatpush1.bf16.msra.mxu0 %v206
  %269 = vmatprep.subr.bf16.mxu0 0
  %270 = vmatpush1.bf16.msra.mxu0 %v207
  %271 = vmatprep.subr.bf16.mxu0 0
  %272 = vmatpush1.bf16.msra.mxu0 %v208
  %273 = vmatprep.subr.bf16.mxu0 0
  %274 = vmatpush1.bf16.msra.mxu0 %v209
  %275 = vmatprep.subr.bf16.mxu0 0
  %276 = vmatpush1.bf16.msra.mxu0 %v210
  %277 = vmatprep.subr.bf16.mxu0 0
  %278 = vmatpush1.bf16.msra.mxu0 %v211
  %279 = vmatprep.subr.bf16.mxu0 0
  %280 = vmatpush1.bf16.msra.mxu0 %v212
  %281 = vmatprep.subr.bf16.mxu0 0
  %282 = vmatpush1.bf16.msra.mxu0 %v213
  %283 = vmatprep.subr.bf16.mxu0 0
  %284 = vmatpush1.bf16.msra.mxu0 %v214
  %285 = vmatprep.mubr.bf16.mxu0 %v93
  %286 = vmatmul.mubr.bf16.gmra.mrb[0].mxu0 %v92
  %v287 = vpop.f32.mrb[0].mxu0
  %v288 = vadd.f32 %v84, %v287
  %v289 = vpop.f32.mrb[0].mxu0
  %v290 = vpop.f32.mrb[0].mxu0
  %v291 = vpop.f32.mrb[0].mxu0
  %292 = vdwg.mxu0
  %293 = vmatprep.subr.bf16.mxu0 0
  %294 = vmatpush1.bf16.msra.mxu0 %v215
  %295 = vmatprep.subr.bf16.mxu0 0
  %296 = vmatpush1.bf16.msra.mxu0 %v216
  %297 = vmatprep.subr.bf16.mxu0 0
  %298 = vmatpush1.bf16.msra.mxu0 %v217
  %299 = vmatprep.subr.bf16.mxu0 0
  %300 = vmatpush1.bf16.msra.mxu0 %v218
  %301 = vmatprep.subr.bf16.mxu0 0
  %302 = vmatpush1.bf16.msra.mxu0 %v219
  %303 = vmatprep.subr.bf16.mxu0 0
  %304 = vmatpush1.bf16.msra.mxu0 %v220
  %305 = vmatprep.subr.bf16.mxu0 0
  %306 = vmatpush1.bf16.msra.mxu0 %v221
  %307 = vmatprep.subr.bf16.mxu0 0
  %308 = vmatpush1.bf16.msra.mxu0 %v222
  %309 = vmatprep.subr.bf16.mxu0 0
  %310 = vmatpush1.bf16.msra.mxu0 %v223
  %311 = vmatprep.subr.bf16.mxu0 0
  %312 = vmatpush1.bf16.msra.mxu0 0
  %313 = vmatprep.subr.bf16.mxu0 0
  %314 = vmatpush1.bf16.msra.mxu0 0
  %315 = vmatprep.subr.bf16.mxu0 0
  %316 = vmatpush1.bf16.msra.mxu0 0
  %317 = vmatprep.subr.bf16.mxu0 0
  %318 = vmatpush1.bf16.msra.mxu0 0
  %319 = vmatprep.subr.bf16.mxu0 0
  %320 = vmatpush1.bf16.msra.mxu0 0
  %321 = vmatprep.subr.bf16.mxu0 0
  %322 = vmatpush1.bf16.msra.mxu0 0
  %323 = vmatprep.subr.bf16.mxu0 0
  %324 = vmatpush1.bf16.msra.mxu0 0
  %325 = vmatprep.mubr.bf16.mxu0 %v251
  %326 = vmatmul.mubr.bf16.gmra.mrb[0].mxu0 %v94
  %v327 = vpop.f32.mrb[0].mxu0
  %v328 = vadd.f32 %v288, %v327
  %v329 = vpop.f32.mrb[0].mxu0
  %v330 = vpop.f32.mrb[0].mxu0
  %v331 = vpop.f32.mrb[0].mxu0
  %332 = vdwg.mxu0
  %v333 = vmax.f32 %v328, 0.0
  %v334 = vpack.c.bf16 %v333, %v333
  %v335 = vld [vmem:[%s3] sm:$0xf]
  %v336 = vld [vmem:[%s3 + $0x4] sm:$0xf]
  %v337 = vld [vmem:[%s3 + $0x8] sm:$0xf]
  %v338 = vld [vmem:[%s3 + $0xc] sm:$0xf]
  %v339 = vld [vmem:[%s3 + $0x10] sm:$0xf]
  %v340 = vld [vmem:[%s3 + $0x14] sm:$0xf]
  %v341 = vld [vmem:[%s3 + $0x18] sm:$0xf]
  %v342 = vld [vmem:[%s3 + $0x1c] sm:$0xf]
  %v343 = vld [vmem:[%s3 + $0x20] sm:$0xf]
  %v344 = vld [vmem:[%s3 + $0x24] sm:$0xf]
  %v345 = vld [vmem:[%s3 + $0x28] sm:$0xf]
  %v346 = vld [vmem:[%s3 + $0x2c] sm:$0xf]
  %v347 = vld [vmem:[%s3 + $0x30] sm:$0xf]
  %v348 = vld [vmem:[%s3 + $0x34] sm:$0xf]
  %v349 = vld [vmem:[%s3 + $0x38] sm:$0xf]
  %v350 = vld [vmem:[%s3 + $0x3c] sm:$0xf]
  %v351 = vld [vmem:[%s4] sm:$0x1]
  %v353 = vlaneseq
  %v354 = vshrl.u32 %v353, 7
  %v355 = vsub.s32 0, %v354
  %v356 = vrot.slane %v351, %v355
  %v374 = vunpack.c.l.b16 %v335
  %v375 = vunpack.c.l.b16 %v336
  %v376 = vunpack.c.l.b16 %v337
  %v377 = vunpack.c.l.b16 %v338
  %v378 = vunpack.c.l.b16 %v339
  %v379 = vunpack.c.l.b16 %v340
  %v380 = vunpack.c.l.b16 %v341
  %v381 = vunpack.c.l.b16 %v342
  %v382 = vunpack.c.l.b16 %v343
  %v383 = vunpack.c.l.b16 %v344
  %v384 = vunpack.c.l.b16 %v345
  %v385 = vunpack.c.l.b16 %v346
  %v386 = vunpack.c.l.b16 %v347
  %v387 = vunpack.c.l.b16 %v348
  %v388 = vunpack.c.l.b16 %v349
  %v389 = vunpack.c.l.b16 %v350
  %v390 = vpack.c.b16 %v375, %v374
  %v391 = vpack.c.b16 %v377, %v376
  %v392 = vpack.c.b16 %v379, %v378
  %v393 = vpack.c.b16 %v381, %v380
  %v394 = vpack.c.b16 %v383, %v382
  %v395 = vpack.c.b16 %v385, %v384
  %v396 = vpack.c.b16 %v387, %v386
  %v397 = vpack.c.b16 %v389, %v388
  %406 = vmatprep.subr.bf16.mxu0 0
  %407 = vmatpush1.bf16.msra.mxu0 %v390
  %408 = vmatprep.subr.bf16.mxu0 0
  %409 = vmatpush1.bf16.msra.mxu0 %v391
  %410 = vmatprep.subr.bf16.mxu0 0
  %411 = vmatpush1.bf16.msra.mxu0 %v392
  %412 = vmatprep.subr.bf16.mxu0 0
  %413 = vmatpush1.bf16.msra.mxu0 %v393
  %414 = vmatprep.subr.bf16.mxu0 0
  %415 = vmatpush1.bf16.msra.mxu0 %v394
  %416 = vmatprep.subr.bf16.mxu0 0
  %417 = vmatpush1.bf16.msra.mxu0 %v395
  %418 = vmatprep.subr.bf16.mxu0 0
  %419 = vmatpush1.bf16.msra.mxu0 %v396
  %420 = vmatprep.subr.bf16.mxu0 0
  %421 = vmatpush1.bf16.msra.mxu0 %v397
  %422 = vmatprep.subr.bf16.mxu0 0
  %423 = vmatpush1.bf16.msra.mxu0 0
  %424 = vmatprep.subr.bf16.mxu0 0
  %425 = vmatpush1.bf16.msra.mxu0 0
  %426 = vmatprep.subr.bf16.mxu0 0
  %427 = vmatpush1.bf16.msra.mxu0 0
  %428 = vmatprep.subr.bf16.mxu0 0
  %429 = vmatpush1.bf16.msra.mxu0 0
  %430 = vmatprep.subr.bf16.mxu0 0
  %431 = vmatpush1.bf16.msra.mxu0 0
  %432 = vmatprep.subr.bf16.mxu0 0
  %433 = vmatpush1.bf16.msra.mxu0 0
  %434 = vmatprep.subr.bf16.mxu0 0
  %435 = vmatpush1.bf16.msra.mxu0 0
  %436 = vmatprep.subr.bf16.mxu0 0
  %437 = vmatpush1.bf16.msra.mxu0 0
  %438 = vmatprep.mubr.bf16.mxu0 0
  %439 = vmatmul.mubr.bf16.gmra.mrb[0].mxu0 %v334
  %v440 = vpop.f32.mrb[0].mxu0
  %v441 = vadd.f32 %v356, %v440
  %v442 = vpop.f32.mrb[0].mxu0
  %v443 = vpop.f32.mrb[0].mxu0
  %v444 = vpop.f32.mrb[0].mxu0
  %445 = vdwg.mxu0
  %v446 = vmax.f32 %v441, 0.0
  %v447 = vpack.c.bf16 %v446, %v446
  %v448 = vld [vmem:[%s5] sm:$0xf]
  %v449 = vld [vmem:[%s5 + $0x4] sm:$0xf]
  %v450 = vld [vmem:[%s5 + $0x8] sm:$0xf]
  %v451 = vld [vmem:[%s5 + $0xc] sm:$0xf]
  %v452 = vld [vmem:[%s5 + $0x10] sm:$0xf]
  %v453 = vld [vmem:[%s5 + $0x14] sm:$0xf]
  %v454 = vld [vmem:[%s5 + $0x18] sm:$0xf]
  %v455 = vld [vmem:[%s5 + $0x1c] sm:$0xf]
  %v456 = vld [vmem:[%s5 + $0x20] sm:$0xf]
  %v457 = vld [vmem:[%s5 + $0x24] sm:$0xf]
  %v458 = vld [vmem:[%s5 + $0x28] sm:$0xf]
  %v459 = vld [vmem:[%s5 + $0x2c] sm:$0xf]
  %v460 = vld [vmem:[%s5 + $0x30] sm:$0xf]
  %v461 = vld [vmem:[%s5 + $0x34] sm:$0xf]
  %v462 = vld [vmem:[%s5 + $0x38] sm:$0xf]
  %v463 = vld [vmem:[%s5 + $0x3c] sm:$0xf]
  %v464 = vld [vmem:[%s6] sm:$0x1]
  %v466 = vlaneseq
  %v467 = vshrl.u32 %v466, 7
  %v468 = vsub.s32 0, %v467
  %v469 = vrot.slane %v464, %v468
  %v487 = vunpack.c.l.b16 %v448
  %v488 = vunpack.c.l.b16 %v449
  %v489 = vunpack.c.l.b16 %v450
  %v490 = vunpack.c.l.b16 %v451
  %v491 = vunpack.c.l.b16 %v452
  %v492 = vunpack.c.l.b16 %v453
  %v493 = vunpack.c.l.b16 %v454
  %v494 = vunpack.c.l.b16 %v455
  %v495 = vunpack.c.l.b16 %v456
  %v496 = vunpack.c.l.b16 %v457
  %v497 = vunpack.c.l.b16 %v458
  %v498 = vunpack.c.l.b16 %v459
  %v499 = vunpack.c.l.b16 %v460
  %v500 = vunpack.c.l.b16 %v461
  %v501 = vunpack.c.l.b16 %v462
  %v502 = vunpack.c.l.b16 %v463
  %v503 = vpack.c.b16 %v488, %v487
  %v504 = vpack.c.b16 %v490, %v489
  %v505 = vpack.c.b16 %v492, %v491
  %v506 = vpack.c.b16 %v494, %v493
  %v507 = vpack.c.b16 %v496, %v495
  %v508 = vpack.c.b16 %v498, %v497
  %v509 = vpack.c.b16 %v500, %v499
  %v510 = vpack.c.b16 %v502, %v501
  %519 = vmatprep.subr.bf16.mxu0 0
  %520 = vmatpush1.bf16.msra.mxu0 %v503
  %521 = vmatprep.subr.bf16.mxu0 0
  %522 = vmatpush1.bf16.msra.mxu0 %v504
  %523 = vmatprep.subr.bf16.mxu0 0
  %524 = vmatpush1.bf16.msra.mxu0 %v505
  %525 = vmatprep.subr.bf16.mxu0 0
  %526 = vmatpush1.bf16.msra.mxu0 %v506
  %527 = vmatprep.subr.bf16.mxu0 0
  %528 = vmatpush1.bf16.msra.mxu0 %v507
  %529 = vmatprep.subr.bf16.mxu0 0
  %530 = vmatpush1.bf16.msra.mxu0 %v508
  %531 = vmatprep.subr.bf16.mxu0 0
  %532 = vmatpush1.bf16.msra.mxu0 %v509
  %533 = vmatprep.subr.bf16.mxu0 0
  %534 = vmatpush1.bf16.msra.mxu0 %v510
  %535 = vmatprep.subr.bf16.mxu0 0
  %536 = vmatpush1.bf16.msra.mxu0 0
  %537 = vmatprep.subr.bf16.mxu0 0
  %538 = vmatpush1.bf16.msra.mxu0 0
  %539 = vmatprep.subr.bf16.mxu0 0
  %540 = vmatpush1.bf16.msra.mxu0 0
  %541 = vmatprep.subr.bf16.mxu0 0
  %542 = vmatpush1.bf16.msra.mxu0 0
  %543 = vmatprep.subr.bf16.mxu0 0
  %544 = vmatpush1.bf16.msra.mxu0 0
  %545 = vmatprep.subr.bf16.mxu0 0
  %546 = vmatpush1.bf16.msra.mxu0 0
  %547 = vmatprep.subr.bf16.mxu0 0
  %548 = vmatpush1.bf16.msra.mxu0 0
  %549 = vmatprep.subr.bf16.mxu0 0
  %550 = vmatpush1.bf16.msra.mxu0 0
  %551 = vmatprep.mubr.bf16.mxu0 0
  %552 = vmatmul.mubr.bf16.gmra.mrb[0].mxu0 %v447
  %v553 = vpop.f32.mrb[0].mxu0
  %v554 = vadd.f32 %v469, %v553
  %v555 = vpop.f32.mrb[0].mxu0
  %v556 = vpop.f32.mrb[0].mxu0
  %v557 = vpop.f32.mrb[0].mxu0
  %558 = vdwg.mxu0
  %559 = vst [vmem:[%s7] sm:$0xff] %v554
  // Predicated region
  $region30: #{convnet_forward.9} parent=0 // pred_check
    _
  $region31: #{convnet_forward.9} parent=0 // pred_check_branch
    %561 = sbr.rel (0) target = $region33
  $region32: #{convnet_forward.9} parent=0 // pred_region
    _
  $region33: #{convnet_forward.9} parent=0 // pred_fallthru
    _
  // Predicated region
  $region34: #{convnet_forward.9} parent=0 // pred_check
    _
  $region35: #{convnet_forward.9} parent=0 // pred_check_branch
    %563 = sbr.rel (0) target = $region37
  $region36: #{convnet_forward.9} parent=0 // pred_region
    _
  $region37: #{convnet_forward.9} parent=0 // pred_fallthru
    _

</llo_original>
